<compile_context>
chip_gen: v7x
topology: tpu7x:2x2x1
jax: 0.10.0
libtpu: 0.0.40
codegen_flags: <defaults>
</compile_context>

<pallas_src>
import jax
import jax.numpy as jnp
from jax.experimental import pallas as pl
from jax.experimental.pallas import tpu as pltpu


def _round_up(x, m):
    return ((x + m - 1) // m) * m


def qnet_kernel(xt_ref, w1t_ref, b1_ref, w2t_ref, b2_ref, w3t_ref, b3_ref, o_ref):
    # xt_ref : (F, tile_b)  bf16   (F = state_dim + action_dim, batch on lanes)
    # w1t_ref: (H, F) bf16,  b1_ref: (H, 1) f32
    # w2t_ref: (H, H) bf16,  b2_ref: (H, 1) f32
    # w3t_ref: (8, H) bf16   (row 0 = w3, rows 1..7 zero)
    # b3_ref : (1, 1) f32 in SMEM
    # o_ref  : (1, tile_b) f32     (lane-dense q row)

    # Layer 1: W1^T @ x^T  -> (H, tile_b), bf16 MXU, f32 accumulation.
    h1 = jnp.dot(w1t_ref[...], xt_ref[...], preferred_element_type=jnp.float32)
    h1 = jnp.maximum(h1 + b1_ref[...], 0.0).astype(jnp.bfloat16)   # bias + ReLU (VPU)

    # Layer 2: W2^T @ h1 -> (H, tile_b).
    h2 = jnp.dot(w2t_ref[...], h1, preferred_element_type=jnp.float32)
    h2 = jnp.maximum(h2 + b2_ref[...], 0.0).astype(jnp.bfloat16)

    # Layer 3 (256 -> 1): tiny MXU dot; only row 0 of the (8, tile_b) result is real.
    q = jnp.dot(w3t_ref[...], h2, preferred_element_type=jnp.float32)
    o_ref[...] = (q[0:1, :] + b3_ref[0, 0]).astype(o_ref.dtype)


def prepare_params(params):
    """One-time conversion of (PyTorch-layout) params to kernel layout.

    Do this once, outside the training/inference loop, so the casts/transposes
    are not re-emitted as XLA ops on every forward call.
    """
    w1, b1, w2, b2, w3, b3 = params
    H = w1.shape[1]
    w1t = jnp.asarray(w1.T, jnp.bfloat16)                       # (H, F)
    w2t = jnp.asarray(w2.T, jnp.bfloat16)                       # (H, H)
    w3t = jnp.zeros((8, H), jnp.bfloat16).at[0].set(
        jnp.asarray(w3[:, 0], jnp.bfloat16))                    # (8, H), row 0 = w3
    b1c = jnp.asarray(b1.reshape(H, 1), jnp.float32)            # column biases
    b2c = jnp.asarray(b2.reshape(H, 1), jnp.float32)
    b3s = jnp.asarray(b3.reshape(1, 1), jnp.float32)            # SMEM scalar
    return (w1t, b1c, w2t, b2c, w3t, b3s)


def qnetwork_forward(state, action, prepared, *, tile_b=1024):
    """Pallas forward pass of QNetwork.

    state: (B, S) f32, action: (B, A) f32, prepared = prepare_params(params).
    Returns q_value: (B, 1) f32.

    tile_b must be a multiple of 128 (lane width); multiples of 256 keep full
    MXU column groups.  On v7x pick tile_b <= B/2 so the 'parallel' batch axis
    spans both TensorCores; on v5e/v6e prefer the single largest tile that fits.
    """
    w1t, b1c, w2t, b2c, w3t, b3s = prepared
    B, S = state.shape
    A = action.shape[1]
    F = S + A
    H = w1t.shape[0]
    assert tile_b % 128 == 0, "tile_b must be a multiple of 128 (lane alignment)"

    # Fused concat + batch-minor layout: x^T is (F, B) so the batch lives on
    # the lane axis and every activation (and the output) is lane-dense.
    xt = jnp.concatenate([state, action], axis=1).astype(jnp.bfloat16).T   # (F, B)

    # Don't over-pad small batches: clamp the tile to the 128-aligned batch.
    tile = min(tile_b, _round_up(B, 128))
    n_tiles = pl.cdiv(B, tile)
    padded_B = n_tiles * tile
    if padded_B != B:
        xt = jnp.pad(xt, ((0, 0), (0, padded_B - B)))   # padded cols -> garbage q, sliced off

    rep = lambda i: (0, 0)   # weights/biases: same full block for every batch tile

    out = pl.pallas_call(
        qnet_kernel,
        out_shape=jax.ShapeDtypeStruct((1, padded_B), jnp.float32),
        grid_spec=pltpu.PrefetchScalarGridSpec(
            num_scalar_prefetch=0,
            grid=(n_tiles,),
            in_specs=[
                pl.BlockSpec((F, tile), lambda i: (0, i)),          # x^T tile
                pl.BlockSpec((H, F), rep),                          # W1^T
                pl.BlockSpec((H, 1), rep),                          # b1 (column)
                pl.BlockSpec((H, H), rep),                          # W2^T
                pl.BlockSpec((H, 1), rep),                          # b2 (column)
                pl.BlockSpec((8, H), rep),                          # W3^T (padded to 8 rows)
                pl.BlockSpec(memory_space=pltpu.MemorySpace.SMEM),  # b3 scalar
            ],
            out_specs=pl.BlockSpec((1, tile), lambda i: (0, i)),    # lane-dense q row
        ),
        compiler_params=pltpu.CompilerParams(
            dimension_semantics=("parallel",),
            vmem_limit_bytes=32 * 1024 * 1024,   # covers big tiles on v5e's 16 MiB default
        ),
    )(xt, w1t, b1c, w2t, b2c, w3t, b3s)

    return out[0, :B].reshape(B, 1)


def init_params(key, state_dim, action_dim, hidden=256):
    """Deterministic init mimicking PyTorch nn.Linear default (U[-1/sqrt(fan_in), ...])."""
    in_dim = state_dim + action_dim
    k = jax.random.split(key, 6)

    def uni(kk, shape, fan_in):
        bound = 1.0 / jnp.sqrt(jnp.float32(fan_in))
        return jax.random.uniform(kk, shape, jnp.float32, -bound, bound)

    w1 = uni(k[0], (in_dim, hidden), in_dim)
    b1 = uni(k[1], (1, hidden), in_dim)
    w2 = uni(k[2], (hidden, hidden), hidden)
    b2 = uni(k[3], (1, hidden), hidden)
    w3 = uni(k[4], (hidden, 1), hidden)
    b3 = uni(k[5], (1, 1), hidden)
    return (w1, b1, w2, b2, w3, b3)


def qnetwork_ref(state, action, params):
    """Pure-JAX f32 reference for correctness check."""
    w1, b1, w2, b2, w3, b3 = params
    x = jnp.concatenate([state, action], axis=1)
    h1 = jax.nn.relu(x @ w1 + b1)
    h2 = jax.nn.relu(h1 @ w2 + b2)
    return h2 @ w3 + b3


if __name__ == "__main__":
    # Small demo shapes; batch=200 with tile_b=128 exercises both the padding
    # path (200 -> 256) and a 2-step "parallel" grid (megacore-friendly).
    state_dim, action_dim, batch = 12, 6, 200
    key = jax.random.PRNGKey(0)
    kp, ks, ka = jax.random.split(key, 3)

    params = init_params(kp, state_dim, action_dim)
    prepared = prepare_params(params)                 # one-time weight prep
    state = jax.random.normal(ks, (batch, state_dim), jnp.float32)
    action = jax.random.normal(ka, (batch, action_dim), jnp.float32)

    q = qnetwork_forward(state, action, prepared, tile_b=128)
    q = jax.block_until_ready(q)

    q_ref = qnetwork_ref(state, action, params)
    assert q.shape == (batch, 1)
    # bf16 MXU operands with f32 accumulation -> relaxed tolerance vs f32 ref.
    assert jnp.allclose(q, q_ref, atol=5e-2, rtol=5e-2), "mismatch vs reference"
    print("KERNEL_OK")
</pallas_src>

<mosaic_0001>
module attributes {stable_mosaic.version = 11 : i64} {
  func.func @qnet_kernel(%arg0: i32, %arg1: memref<18x128xbf16, #tpu.memory_space<vmem>>, %arg2: memref<256x18xbf16, #tpu.memory_space<vmem>>, %arg3: memref<256x1xf32, #tpu.memory_space<vmem>>, %arg4: memref<256x256xbf16, #tpu.memory_space<vmem>>, %arg5: memref<256x1xf32, #tpu.memory_space<vmem>>, %arg6: memref<8x256xbf16, #tpu.memory_space<vmem>>, %arg7: memref<1x1xf32, #tpu.memory_space<smem>>, %arg8: memref<1x128xf32, #tpu.memory_space<vmem>>) attributes {dimension_semantics = [#tpu.dimension_semantics<parallel>], iteration_bounds = array<i64: 2>, scalar_prefetch = 0 : i64, scratch_operands = 0 : i64, tpu.core_type = #tpu.core_type<tc>, window_params = [{transform_indices = @transform_0, window_bounds = array<i64: 18, 128>}, {pipeline_mode = #tpu.pipeline_mode<synchronous>, transform_indices = @transform_1, window_bounds = array<i64: 256, 18>}, {pipeline_mode = #tpu.pipeline_mode<synchronous>, transform_indices = @transform_2, window_bounds = array<i64: 256, 1>}, {pipeline_mode = #tpu.pipeline_mode<synchronous>, transform_indices = @transform_3, window_bounds = array<i64: 256, 256>}, {pipeline_mode = #tpu.pipeline_mode<synchronous>, transform_indices = @transform_4, window_bounds = array<i64: 256, 1>}, {pipeline_mode = #tpu.pipeline_mode<synchronous>, transform_indices = @transform_5, window_bounds = array<i64: 8, 256>}, {transform_indices = @transform_6, window_bounds = array<i64: 1, 1>}, {transform_indices = @transform_7, window_bounds = array<i64: 1, 128>}]} {
    %c0 = arith.constant 0 : index
    %c0_0 = arith.constant 0 : index
    %0 = vector.load %arg2[%c0, %c0_0] : memref<256x18xbf16, #tpu.memory_space<vmem>>, vector<256x18xbf16>
    %c0_1 = arith.constant 0 : index
    %c0_2 = arith.constant 0 : index
    %1 = vector.load %arg1[%c0_1, %c0_2] : memref<18x128xbf16, #tpu.memory_space<vmem>>, vector<18x128xbf16>
    %cst = arith.constant dense<0.000000e+00> : vector<256x128xf32>
    %2 = tpu.matmul %0, %1, %cst {dimension_numbers = #tpu.dot_dimension_numbers<[1], [0], [0], [1], [0, 0, 1, 1], [], []>} : vector<256x18xbf16>, vector<18x128xbf16>, vector<256x128xf32> -> vector<256x128xf32>
    %c0_3 = arith.constant 0 : index
    %c0_4 = arith.constant 0 : index
    %3 = vector.load %arg3[%c0_3, %c0_4] : memref<256x1xf32, #tpu.memory_space<vmem>>, vector<256x1xf32>
    %4 = vector.broadcast %3 : vector<256x1xf32> to vector<256x128xf32>
    %5 = arith.addf %2, %4 : vector<256x128xf32>
    %cst_5 = arith.constant 0.000000e+00 : f32
    %6 = vector.broadcast %cst_5 : f32 to vector<256x128xf32>
    %7 = arith.maximumf %5, %6 : vector<256x128xf32>
    %8 = arith.truncf %7 : vector<256x128xf32> to vector<256x128xbf16>
    %c0_6 = arith.constant 0 : index
    %c0_7 = arith.constant 0 : index
    %9 = vector.load %arg4[%c0_6, %c0_7] : memref<256x256xbf16, #tpu.memory_space<vmem>>, vector<256x256xbf16>
    %cst_8 = arith.constant dense<0.000000e+00> : vector<256x128xf32>
    %10 = tpu.matmul %9, %8, %cst_8 {dimension_numbers = #tpu.dot_dimension_numbers<[1], [0], [0], [1], [0, 0, 1, 1], [], []>} : vector<256x256xbf16>, vector<256x128xbf16>, vector<256x128xf32> -> vector<256x128xf32>
    %c0_9 = arith.constant 0 : index
    %c0_10 = arith.constant 0 : index
    %11 = vector.load %arg5[%c0_9, %c0_10] : memref<256x1xf32, #tpu.memory_space<vmem>>, vector<256x1xf32>
    %12 = vector.broadcast %11 : vector<256x1xf32> to vector<256x128xf32>
    %13 = arith.addf %10, %12 : vector<256x128xf32>
    %cst_11 = arith.constant 0.000000e+00 : f32
    %14 = vector.broadcast %cst_11 : f32 to vector<256x128xf32>
    %15 = arith.maximumf %13, %14 : vector<256x128xf32>
    %16 = arith.truncf %15 : vector<256x128xf32> to vector<256x128xbf16>
    %c0_12 = arith.constant 0 : index
    %c0_13 = arith.constant 0 : index
    %17 = vector.load %arg6[%c0_12, %c0_13] : memref<8x256xbf16, #tpu.memory_space<vmem>>, vector<8x256xbf16>
    %cst_14 = arith.constant dense<0.000000e+00> : vector<8x128xf32>
    %18 = tpu.matmul %17, %16, %cst_14 {dimension_numbers = #tpu.dot_dimension_numbers<[1], [0], [0], [1], [0, 0, 1, 1], [], []>} : vector<8x256xbf16>, vector<256x128xbf16>, vector<8x128xf32> -> vector<8x128xf32>
    %19 = vector.extract_strided_slice %18 {offsets = [0, 0], sizes = [1, 128], strides = [1, 1]} : vector<8x128xf32> to vector<1x128xf32>
    %c0_15 = arith.constant 0 : index
    %c0_16 = arith.constant 0 : index
    %20 = memref.load %arg7[%c0_15, %c0_16] : memref<1x1xf32, #tpu.memory_space<smem>>
    %21 = vector.broadcast %20 : f32 to vector<1x128xf32>
    %22 = arith.addf %19, %21 : vector<1x128xf32>
    %c0_17 = arith.constant 0 : index
    %c0_18 = arith.constant 0 : index
    %23 = vector.load %arg8[%c0_17, %c0_18] : memref<1x128xf32, #tpu.memory_space<vmem>>, vector<1x128xf32>
    tpu.vector_store %arg8[%c0_17, %c0_18], %22 {strides = array<i32>} : memref<1x128xf32, #tpu.memory_space<vmem>>, vector<1x128xf32>,
    return
  }
  func.func @transform_0(%arg0: i32) -> (i32, i32) {
    %c0_i32 = arith.constant 0 : i32
    %c0_i32_0 = arith.constant 0 : i32
    return %c0_i32, %arg0 : i32, i32
  }
  func.func @transform_1(%arg0: i32) -> (i32, i32) {
    %c0_i32 = arith.constant 0 : i32
    %c0_i32_0 = arith.constant 0 : i32
    %c0_i32_1 = arith.constant 0 : i32
    return %c0_i32, %c0_i32_0 : i32, i32
  }
  func.func @transform_2(%arg0: i32) -> (i32, i32) {
    %c0_i32 = arith.constant 0 : i32
    %c0_i32_0 = arith.constant 0 : i32
    %c0_i32_1 = arith.constant 0 : i32
    return %c0_i32, %c0_i32_0 : i32, i32
  }
  func.func @transform_3(%arg0: i32) -> (i32, i32) {
    %c0_i32 = arith.constant 0 : i32
    %c0_i32_0 = arith.constant 0 : i32
    %c0_i32_1 = arith.constant 0 : i32
    return %c0_i32, %c0_i32_0 : i32, i32
  }
  func.func @transform_4(%arg0: i32) -> (i32, i32) {
    %c0_i32 = arith.constant 0 : i32
    %c0_i32_0 = arith.constant 0 : i32
    %c0_i32_1 = arith.constant 0 : i32
    return %c0_i32, %c0_i32_0 : i32, i32
  }
  func.func @transform_5(%arg0: i32) -> (i32, i32) {
    %c0_i32 = arith.constant 0 : i32
    %c0_i32_0 = arith.constant 0 : i32
    %c0_i32_1 = arith.constant 0 : i32
    return %c0_i32, %c0_i32_0 : i32, i32
  }
  func.func @transform_6(%arg0: i32) -> (i32, i32) {
    %c0_i32 = arith.constant 0 : i32
    %c0_i32_0 = arith.constant 0 : i32
    %c0_i32_1 = arith.constant 0 : i32
    return %c0_i32, %c0_i32_0 : i32, i32
  }
  func.func @transform_7(%arg0: i32) -> (i32, i32) {
    %c0_i32 = arith.constant 0 : i32
    %c0_i32_0 = arith.constant 0 : i32
    return %c0_i32, %arg0 : i32, i32
  }
}

</mosaic_0001>

<llo_original>
// kernel: tpu_custom_call.1
$region0: #{tpu_custom_call.1}
  #allocation0 [shape = 'u32[]', space=smem, size = 0x4, offset = 0x4, fixed_abs, tag = 'smem constant byte address 0x4 - core index']
  #allocation1 [shape = 'u32[144,128]{1,0:T(1,128)}', space=vmem, size = 0x12000, scoped, tag = 'internal scratch']
  #allocation2 [shape = 'f32[1,1]{1,0:T(1,128)S(6)}', space=smem, size = 0x200, scoped, tag = 'scoped memory for tpu_custom_call.1']
  %s0 = inlined_call_operand.vmem [shape: bf16[18,256], index: 0, kind: input, shape index: {}]
  %s1 = inlined_call_operand.vmem [shape: bf16[256,18], index: 1, kind: input, shape index: {}]
  %s2 = inlined_call_operand.vmem [shape: f32[256,1], index: 2, kind: input, shape index: {}]
  %s3 = inlined_call_operand.vmem [shape: bf16[256,256], index: 3, kind: input, shape index: {}]
  %s4 = inlined_call_operand.vmem [shape: f32[256,1], index: 4, kind: input, shape index: {}]
  %s5 = inlined_call_operand.vmem [shape: bf16[8,256], index: 5, kind: input, shape index: {}]
  %s6 = inlined_call_operand.<no memory space> [shape: f32[1,1], index: 6, kind: input, shape index: {}]
  %s7 = inlined_call_operand.hbm [shape: f32[1,256], index: 7, kind: output, shape index: {}]
  %s8 = sld [smem:[#allocation0]]
  $region102: #{tpu_custom_call.1} parent=0
    _
  %s10 = ssub.s32 1, %s8
  %s11 = scalar_select 0, %s10, %s8
  %12 = sst [smem:[#allocation2]] %s6
  $region1: #{tpu_custom_call.1} parent=0
    #allocation3 [shape = 'u8[12288]{0}', space=vmem, size = 0x3000, scoped, tag = 'input window, operand 0']
    #allocation4 [shape = 'u8[1024]{0}', space=vmem, size = 0x400, scoped, tag = 'output window, operand 0']
    #allocation5 [shape = 's32[2]{0}', space=sflag, size = 0x8, scoped, tag = 'scoped memory for tpu_custom_call.1']
    %13 = vsyncpa [#allocation5], 0
    %s14 = scalar_lea.sflag [#allocation5], 1
    %15 = vsyncpa %s14, 0
    loop: start=0, step=1, limit=4
    $region2: #{tpu_custom_call.1} parent=1 // loop_pre_header
      _
    $region3: #{tpu_custom_call.1} parent=1 // loop_header
      %s17 = sphi 0, %s21
      %p18 = scmp.ge.s32.totalorder %s17, 4
      %s27 = sphi 0, %s29
      %s30 = sphi 0, %s27
      %s31 = sphi 0, %s30
      %s47 = sphi 0, %s31
      %s51 = sphi 0, %s51
      %s53 = sphi 0, %s51
      %s54 = sphi 0, %s53
      %s68 = sphi 0, %s54
      %s72 = sphi 0, %s72
      %s74 = sphi 0, %s72
      %s75 = sphi 0, %s74
      %s89 = sphi 0, %s75
      %s93 = sphi 0, %s93
      %s95 = sphi 0, %s93
      %s96 = sphi 0, %s95
      %s110 = sphi 0, %s96
      %s114 = sphi 0, %s114
      %s116 = sphi 0, %s114
      %s117 = sphi 0, %s116
      %s131 = sphi 0, %s117
      %s135 = sphi 0, %s135
      %s137 = sphi 0, %s135
      %s138 = sphi 0, %s137
      %s152 = sphi 0, %s138
      %s156 = sphi 0, %s156
      %s158 = sphi 0, %s156
      %s159 = sphi 0, %s158
      %s173 = sphi 0, %s159
      %s179 = sphi 0, %s181
      %s182 = sphi 0, %s179
      %s183 = sphi 0, %s182
      %s199 = sphi 0, %s183
    $region4: #{tpu_custom_call.1} parent=1 // loop_header_branch
      %20 = sbr.rel (%p18) target = $region8
    $region5: #{tpu_custom_call.1} parent=1 // loop_body
      %s22 = ssub.s32 %s17, 1
      %s23 = ssub.s32 %s17, 2
      %s24 = sadd.s32 %s17, 1
      %s25 = ssub.s32 %s17, %s24
      %p26 = scmp.eq.s32.totalorder %s25, 0
      %s28 = sadd.s32 %s27, 1
      %s29 = scalar_select %p26, %s27, %s28
      %p32 = pneg %p26
      %p33 = scmp.eq.s32.totalorder %s17, 1
      %p34 = por %p32, %p33
      %p35 = scmp.ne.s32.totalorder %s27, %s30
      %p36 = scmp.eq.s32.totalorder %s17, 0
      %p37 = por %p35, %p36
      %p38 = scmp.ne.s32.totalorder %s27, %s30
      %p39 = scmp.eq.s32.totalorder %s22, 1
      %p40 = por %p38, %p39
      %p41 = scmp.ne.s32.totalorder %s30, %s31
      %p42 = scmp.eq.s32.totalorder %s22, 0
      %p43 = por %p41, %p42
      %p44 = scmp.ne.s32.totalorder %s30, %s31
      %p45 = scmp.eq.s32.totalorder %s23, 1
      %p46 = por %p44, %p45
      %p48 = scmp.ne.s32.totalorder %s31, %s47
      %p49 = scmp.eq.s32.totalorder %s23, 0
      %p50 = por %p48, %p49
      %s52 = sadd.s32 %s51, 1
      %p55 = scmp.eq.s32.totalorder %s17, 1
      %p56 = scmp.ne.s32.totalorder %s51, %s53
      %p57 = scmp.eq.s32.totalorder %s17, 0
      %p58 = por %p56, %p57
      %p59 = scmp.ne.s32.totalorder %s51, %s53
      %p60 = scmp.eq.s32.totalorder %s22, 1
      %p61 = por %p59, %p60
      %p62 = scmp.ne.s32.totalorder %s53, %s54
      %p63 = scmp.eq.s32.totalorder %s22, 0
      %p64 = por %p62, %p63
      %p65 = scmp.ne.s32.totalorder %s53, %s54
      %p66 = scmp.eq.s32.totalorder %s23, 1
      %p67 = por %p65, %p66
      %p69 = scmp.ne.s32.totalorder %s54, %s68
      %p70 = scmp.eq.s32.totalorder %s23, 0
      %p71 = por %p69, %p70
      %s73 = sadd.s32 %s72, 1
      %p76 = scmp.eq.s32.totalorder %s17, 1
      %p77 = scmp.ne.s32.totalorder %s72, %s74
      %p78 = scmp.eq.s32.totalorder %s17, 0
      %p79 = por %p77, %p78
      %p80 = scmp.ne.s32.totalorder %s72, %s74
      %p81 = scmp.eq.s32.totalorder %s22, 1
      %p82 = por %p80, %p81
      %p83 = scmp.ne.s32.totalorder %s74, %s75
      %p84 = scmp.eq.s32.totalorder %s22, 0
      %p85 = por %p83, %p84
      %p86 = scmp.ne.s32.totalorder %s74, %s75
      %p87 = scmp.eq.s32.totalorder %s23, 1
      %p88 = por %p86, %p87
      %p90 = scmp.ne.s32.totalorder %s75, %s89
      %p91 = scmp.eq.s32.totalorder %s23, 0
      %p92 = por %p90, %p91
      %s94 = sadd.s32 %s93, 1
      %p97 = scmp.eq.s32.totalorder %s17, 1
      %p98 = scmp.ne.s32.totalorder %s93, %s95
      %p99 = scmp.eq.s32.totalorder %s17, 0
      %p100 = por %p98, %p99
      %p101 = scmp.ne.s32.totalorder %s93, %s95
      %p102 = scmp.eq.s32.totalorder %s22, 1
      %p103 = por %p101, %p102
      %p104 = scmp.ne.s32.totalorder %s95, %s96
      %p105 = scmp.eq.s32.totalorder %s22, 0
      %p106 = por %p104, %p105
      %p107 = scmp.ne.s32.totalorder %s95, %s96
      %p108 = scmp.eq.s32.totalorder %s23, 1
      %p109 = por %p107, %p108
      %p111 = scmp.ne.s32.totalorder %s96, %s110
      %p112 = scmp.eq.s32.totalorder %s23, 0
      %p113 = por %p111, %p112
      %s115 = sadd.s32 %s114, 1
      %p118 = scmp.eq.s32.totalorder %s17, 1
      %p119 = scmp.ne.s32.totalorder %s114, %s116
      %p120 = scmp.eq.s32.totalorder %s17, 0
      %p121 = por %p119, %p120
      %p122 = scmp.ne.s32.totalorder %s114, %s116
      %p123 = scmp.eq.s32.totalorder %s22, 1
      %p124 = por %p122, %p123
      %p125 = scmp.ne.s32.totalorder %s116, %s117
      %p126 = scmp.eq.s32.totalorder %s22, 0
      %p127 = por %p125, %p126
      %p128 = scmp.ne.s32.totalorder %s116, %s117
      %p129 = scmp.eq.s32.totalorder %s23, 1
      %p130 = por %p128, %p129
      %p132 = scmp.ne.s32.totalorder %s117, %s131
      %p133 = scmp.eq.s32.totalorder %s23, 0
      %p134 = por %p132, %p133
      %s136 = sadd.s32 %s135, 1
      %p139 = scmp.eq.s32.totalorder %s17, 1
      %p140 = scmp.ne.s32.totalorder %s135, %s137
      %p141 = scmp.eq.s32.totalorder %s17, 0
      %p142 = por %p140, %p141
      %p143 = scmp.ne.s32.totalorder %s135, %s137
      %p144 = scmp.eq.s32.totalorder %s22, 1
      %p145 = por %p143, %p144
      %p146 = scmp.ne.s32.totalorder %s137, %s138
      %p147 = scmp.eq.s32.totalorder %s22, 0
      %p148 = por %p146, %p147
      %p149 = scmp.ne.s32.totalorder %s137, %s138
      %p150 = scmp.eq.s32.totalorder %s23, 1
      %p151 = por %p149, %p150
      %p153 = scmp.ne.s32.totalorder %s138, %s152
      %p154 = scmp.eq.s32.totalorder %s23, 0
      %p155 = por %p153, %p154
      %s157 = sadd.s32 %s156, 1
      %p160 = scmp.eq.s32.totalorder %s17, 1
      %p161 = scmp.ne.s32.totalorder %s156, %s158
      %p162 = scmp.eq.s32.totalorder %s17, 0
      %p163 = por %p161, %p162
      %p164 = scmp.ne.s32.totalorder %s156, %s158
      %p165 = scmp.eq.s32.totalorder %s22, 1
      %p166 = por %p164, %p165
      %p167 = scmp.ne.s32.totalorder %s158, %s159
      %p168 = scmp.eq.s32.totalorder %s22, 0
      %p169 = por %p167, %p168
      %p170 = scmp.ne.s32.totalorder %s158, %s159
      %p171 = scmp.eq.s32.totalorder %s23, 1
      %p172 = por %p170, %p171
      %p174 = scmp.ne.s32.totalorder %s159, %s173
      %p175 = scmp.eq.s32.totalorder %s23, 0
      %p176 = por %p174, %p175
      %s177 = ssub.s32 %s17, %s24
      %p178 = scmp.eq.s32.totalorder %s177, 0
      %s180 = sadd.s32 %s179, 1
      %s181 = scalar_select %p178, %s179, %s180
      %p184 = pneg %p178
      %p185 = scmp.eq.s32.totalorder %s17, 1
      %p186 = por %p184, %p185
      %p187 = scmp.ne.s32.totalorder %s179, %s182
      %p188 = scmp.eq.s32.totalorder %s17, 0
      %p189 = por %p187, %p188
      %p190 = scmp.ne.s32.totalorder %s179, %s182
      %p191 = scmp.eq.s32.totalorder %s22, 1
      %p192 = por %p190, %p191
      %p193 = scmp.ne.s32.totalorder %s182, %s183
      %p194 = scmp.eq.s32.totalorder %s22, 0
      %p195 = por %p193, %p194
      %p196 = scmp.ne.s32.totalorder %s182, %s183
      %p197 = scmp.eq.s32.totalorder %s23, 1
      %p198 = por %p196, %p197
      %p200 = scmp.ne.s32.totalorder %s183, %s199
      %p201 = scmp.eq.s32.totalorder %s23, 0
      %p202 = por %p200, %p201
      %p203 = scmp.le.s32.totalorder 1, %s17
      %p204 = scmp.lt.s32.totalorder %s17, 3
      %p205 = pnand %p203, %p204
      %p206 = pneg %p205
      // Predicated region
      $region9: #{tpu_custom_call.1} parent=5 // pred_check
        _
      $region10: #{tpu_custom_call.1} parent=5 // pred_check_branch
        %208 = sbr.rel (%p205) target = $region12
      $region11: #{tpu_custom_call.1} parent=5 // pred_region
        %s209 = ssub.s32 %s17, 1
        // Predicated region
        $region13: #{tpu_custom_call.1} parent=11 // pred_check
          %p210 = pneg %p64
        $region14: #{tpu_custom_call.1} parent=11 // pred_check_branch
          %212 = sbr.rel (%p210) target = $region16
        $region15: #{tpu_custom_call.1} parent=11 // pred_region
          _
        $region16: #{tpu_custom_call.1} parent=11 // pred_fallthru
          _
        // Predicated region
        $region17: #{tpu_custom_call.1} parent=11 // pred_check
          %p213 = pneg %p85
        $region18: #{tpu_custom_call.1} parent=11 // pred_check_branch
          %215 = sbr.rel (%p213) target = $region20
        $region19: #{tpu_custom_call.1} parent=11 // pred_region
          _
        $region20: #{tpu_custom_call.1} parent=11 // pred_fallthru
          _
        // Predicated region
        $region21: #{tpu_custom_call.1} parent=11 // pred_check
          %p216 = pneg %p106
        $region22: #{tpu_custom_call.1} parent=11 // pred_check_branch
          %218 = sbr.rel (%p216) target = $region24
        $region23: #{tpu_custom_call.1} parent=11 // pred_region
          _
        $region24: #{tpu_custom_call.1} parent=11 // pred_fallthru
          _
        // Predicated region
        $region25: #{tpu_custom_call.1} parent=11 // pred_check
          %p219 = pneg %p127
        $region26: #{tpu_custom_call.1} parent=11 // pred_check_branch
          %221 = sbr.rel (%p219) target = $region28
        $region27: #{tpu_custom_call.1} parent=11 // pred_region
          _
        $region28: #{tpu_custom_call.1} parent=11 // pred_fallthru
          _
        // Predicated region
        $region29: #{tpu_custom_call.1} parent=11 // pred_check
          %p222 = pneg %p148
        $region30: #{tpu_custom_call.1} parent=11 // pred_check_branch
          %224 = sbr.rel (%p222) target = $region32
        $region31: #{tpu_custom_call.1} parent=11 // pred_region
          _
        $region32: #{tpu_custom_call.1} parent=11 // pred_fallthru
          _
        // Predicated region
        $region33: #{tpu_custom_call.1} parent=11 // pred_check
          %p225 = pneg %p169
        $region34: #{tpu_custom_call.1} parent=11 // pred_check_branch
          %227 = sbr.rel (%p225) target = $region36
        $region35: #{tpu_custom_call.1} parent=11 // pred_region
          _
        $region36: #{tpu_custom_call.1} parent=11 // pred_fallthru
          _
      $region12: #{tpu_custom_call.1} parent=5 // pred_fallthru
        _
      %p228 = scmp.lt.s32.totalorder %s17, 2
      // Predicated region
      $region37: #{tpu_custom_call.1} parent=5 // pred_check
        %p229 = pneg %p228
      $region38: #{tpu_custom_call.1} parent=5 // pred_check_branch
        %231 = sbr.rel (%p229) target = $region40
      $region39: #{tpu_custom_call.1} parent=5 // pred_region
        // Predicated region
        $region41: #{tpu_custom_call.1} parent=39 // pred_check
          %p232 = pneg %p37
        $region42: #{tpu_custom_call.1} parent=39 // pred_check_branch
          %234 = sbr.rel (%p232) target = $region44
        $region43: #{tpu_custom_call.1} parent=39 // pred_region
          %s235 = sand.u32 %s27, 1
          %s236 = sand.u32 %s27, 1
          %s237 = smul.addr %s236, 12
          %s238 = scalar_lea.vmem [#allocation3], %s237
          %s239 = smul.addr %s17, 4
          %s240 = scalar_lea.vmem %s0, %s239
          // Predicated region
          $region45: #{tpu_custom_call.1} parent=43 // pred_check
            _
          $region46: #{tpu_custom_call.1} parent=43 // pred_check_branch
            %242 = sbr.rel (0) target = $region48
          $region47: #{tpu_custom_call.1} parent=43 // pred_region
            // Predicated region
            $region49: #{tpu_custom_call.1} parent=47 // pred_check
              _
            $region50: #{tpu_custom_call.1} parent=47 // pred_check_branch
              %244 = sbr.rel target = $region52
            $region51: #{tpu_custom_call.1} parent=47 // pred_region
              // Predicated region
              $region64: #{tpu_custom_call.1} parent=51 // pred_check
                _
              $region65: #{tpu_custom_call.1} parent=51 // pred_check_branch
                %263 = sbr.rel (0) target = $region67
              $region66: #{tpu_custom_call.1} parent=51 // pred_region
                loop: start=0, step=1, limit=1
                $region68: #{tpu_custom_call.1} parent=66 // loop_pre_header
                  _
                $region69: #{tpu_custom_call.1} parent=66 // loop_header
                  %s265 = sphi 0, %s269
                  %p266 = scmp.ge.s32.totalorder %s265, 1
                  %s270 = sphi %s240, %s240
                  %s271 = sphi %s238, %s238
                $region70: #{tpu_custom_call.1} parent=66 // loop_header_branch
                  %268 = sbr.rel (%p266) target = $region74
                $region71: #{tpu_custom_call.1} parent=66 // loop_body
                  _
                $region72: #{tpu_custom_call.1} parent=66 // loop_footer
                  %s269 = sadd.s32 1, %s265
                $region73: #{tpu_custom_call.1} parent=66 // loop_footer_branch
                  %264 = sbr.rel target = $region69
                $region74: #{tpu_custom_call.1} parent=66 // loop_exit
                  _
                loop: start=0, step=1, limit=1
                $region75: #{tpu_custom_call.1} parent=66 // loop_pre_header
                  _
                $region76: #{tpu_custom_call.1} parent=66 // loop_header
                  %s274 = sphi 0, %s278
                  %p275 = scmp.ge.s32.totalorder %s274, 1
                  %s279 = sphi %s240, %s240
                  %s280 = sphi %s238, %s238
                $region77: #{tpu_custom_call.1} parent=66 // loop_header_branch
                  %277 = sbr.rel (%p275) target = $region81
                $region78: #{tpu_custom_call.1} parent=66 // loop_body
                  %v281 = vld [vmem:[%s279] sm:$0xf]
                  %282 = vst [vmem:[%s280] sm:$0xf] %v281
                  %v283 = vld [vmem:[%s279 + $0x8] sm:$0xf]
                  %284 = vst [vmem:[%s280 + $0x4] sm:$0xf] %v283
                  %v285 = vld [vmem:[%s279 + $0x10] sm:$0xf]
                  %286 = vst [vmem:[%s280 + $0x8] sm:$0xf] %v285
                $region79: #{tpu_custom_call.1} parent=66 // loop_footer
                  %s278 = sadd.s32 1, %s274
                $region80: #{tpu_custom_call.1} parent=66 // loop_footer_branch
                  %273 = sbr.rel target = $region76
                $region81: #{tpu_custom_call.1} parent=66 // loop_exit
                  _
              $region67: #{tpu_custom_call.1} parent=51 // pred_fallthru
                _
            $region52: #{tpu_custom_call.1} parent=47 // pred_fallthru
              _
            // Predicated region
            $region53: #{tpu_custom_call.1} parent=47 // pred_check
              _
            $region54: #{tpu_custom_call.1} parent=47 // pred_check_branch
              %246 = sbr.rel (0) target = $region56
            $region55: #{tpu_custom_call.1} parent=47 // pred_region
              loop: start=0, step=1, limit=1
              $region57: #{tpu_custom_call.1} parent=55 // loop_pre_header
                _
              $region58: #{tpu_custom_call.1} parent=55 // loop_header
                %s249 = sphi 0, %s253
                %p250 = scmp.ge.s32.totalorder %s249, 1
                %s254 = sphi %s240, %s240
                %s255 = sphi %s238, %s238
              $region59: #{tpu_custom_call.1} parent=55 // loop_header_branch
                %252 = sbr.rel (%p250) target = $region63
              $region60: #{tpu_custom_call.1} parent=55 // loop_body
                %v256 = vld [vmem:[%s254] sm:$0xf]
                %257 = vst [vmem:[%s255] sm:$0xf] %v256
                %v258 = vld [vmem:[%s254 + $0x8] sm:$0xf]
                %259 = vst [vmem:[%s255 + $0x4] sm:$0xf] %v258
                %v260 = vld [vmem:[%s254 + $0x10] sm:$0xf]
                %261 = vst [vmem:[%s255 + $0x8] sm:$0xf] %v260
              $region61: #{tpu_custom_call.1} parent=55 // loop_footer
                %s253 = sadd.s32 1, %s249
              $region62: #{tpu_custom_call.1} parent=55 // loop_footer_branch
                %248 = sbr.rel target = $region58
              $region63: #{tpu_custom_call.1} parent=55 // loop_exit
                _
            $region56: #{tpu_custom_call.1} parent=47 // pred_fallthru
              _
          $region48: #{tpu_custom_call.1} parent=43 // pred_fallthru
            _
          %287 = vnop
        $region44: #{tpu_custom_call.1} parent=39 // pred_fallthru
          _
      $region40: #{tpu_custom_call.1} parent=5 // pred_fallthru
        _
      %p288 = scmp.le.s32.totalorder 1, %s17
      %p289 = scmp.lt.s32.totalorder %s17, 3
      %p290 = pnand %p288, %p289
      %p291 = pneg %p290
      // Predicated region
      $region82: #{tpu_custom_call.1} parent=5 // pred_check
        _
      $region83: #{tpu_custom_call.1} parent=5 // pred_check_branch
        %293 = sbr.rel (%p290) target = $region85
      $region84: #{tpu_custom_call.1} parent=5 // pred_region
        %s294 = ssub.s32 %s17, 1
        %s295 = sand.u32 %s30, 1
        %s296 = sand.u32 %s30, 1
        %s297 = smul.addr %s296, 12
        %s298 = scalar_lea.vmem [#allocation3], %s297
        // Predicated region
        $region86: #{tpu_custom_call.1} parent=84 // pred_check
          %p299 = pneg %p43
        $region87: #{tpu_custom_call.1} parent=84 // pred_check_branch
          %301 = sbr.rel (%p299) target = $region89
        $region88: #{tpu_custom_call.1} parent=84 // pred_region
          _
        $region89: #{tpu_custom_call.1} parent=84 // pred_fallthru
          _
        %s302 = sand.u32 %s30, 1
        %s303 = sand.u32 %s30, 1
        %s304 = smul.addr %s303, 12
        %s305 = scalar_lea.vmem [#allocation3], %s304
        %p306 = pneg %p43
        %p307 = pneg %p40
        %p308 = pneg %p64
        %p309 = pneg %p61
        %p310 = pneg %p85
        %p311 = pneg %p82
        %p312 = pneg %p106
        %p313 = pneg %p103
        %p314 = pneg %p127
        %p315 = pneg %p124
        %p316 = pneg %p148
        %p317 = pneg %p145
        %p318 = pneg %p169
        %p319 = pneg %p166
        %p320 = pneg %p195
        %p321 = pneg %p192
        %s322 = sand.u32 %s182, 1
        %s323 = scalar_lea.sflag [#allocation5], %s322
        %s324 = sand.u32 %s182, 1
        %s325 = scalar_lea.vmem [#allocation4], %s324
        %v327 = vld [vmem:[%s1] sm:$0xf]
        %v328 = vld [vmem:[%s1 + $0x4] sm:$0xf]
        %v329 = vld [vmem:[%s1 + $0x8] sm:$0xf]
        %v330 = vld [vmem:[%s1 + $0xc] sm:$0xf]
        %v331 = vld [vmem:[%s1 + $0x10] sm:$0xf]
        %v332 = vld [vmem:[%s1 + $0x14] sm:$0xf]
        %v333 = vld [vmem:[%s1 + $0x18] sm:$0xf]
        %v334 = vld [vmem:[%s1 + $0x1c] sm:$0xf]
        %v335 = vld [vmem:[%s1 + $0x20] sm:$0xf]
        %v336 = vld [vmem:[%s1 + $0x24] sm:$0xf]
        %v337 = vld [vmem:[%s1 + $0x28] sm:$0xf]
        %v338 = vld [vmem:[%s1 + $0x2c] sm:$0xf]
        %v339 = vld [vmem:[%s1 + $0x30] sm:$0xf]
        %v340 = vld [vmem:[%s1 + $0x34] sm:$0xf]
        %v341 = vld [vmem:[%s1 + $0x38] sm:$0xf]
        %v342 = vld [vmem:[%s1 + $0x3c] sm:$0xf]
        %v343 = vld [vmem:[%s1 + $0x40] sm:$0xf]
        %v344 = vld [vmem:[%s1 + $0x44] sm:$0xf]
        %v345 = vld [vmem:[%s1 + $0x48] sm:$0xf]
        %v346 = vld [vmem:[%s1 + $0x4c] sm:$0xf]
        %v347 = vld [vmem:[%s1 + $0x50] sm:$0xf]
        %v348 = vld [vmem:[%s1 + $0x54] sm:$0xf]
        %v349 = vld [vmem:[%s1 + $0x58] sm:$0xf]
        %v350 = vld [vmem:[%s1 + $0x5c] sm:$0xf]
        %v351 = vld [vmem:[%s1 + $0x60] sm:$0xf]
        %v352 = vld [vmem:[%s1 + $0x64] sm:$0xf]
        %v353 = vld [vmem:[%s1 + $0x68] sm:$0xf]
        %v354 = vld [vmem:[%s1 + $0x6c] sm:$0xf]
        %v355 = vld [vmem:[%s1 + $0x70] sm:$0xf]
        %v356 = vld [vmem:[%s1 + $0x74] sm:$0xf]
        %v357 = vld [vmem:[%s1 + $0x78] sm:$0xf]
        %v358 = vld [vmem:[%s1 + $0x7c] sm:$0xf]
        %v359 = vld [vmem:[%s298] sm:$0xf]
        %v360 = vld [vmem:[%s298 + $0x4] sm:$0xf]
        %v361 = vld [vmem:[%s298 + $0x8] sm:$0x1]
        %v362 = vld [vmem:[%s2] sm:$0xff]
        %v363 = vld [vmem:[%s2 + $0x8] sm:$0xff]
        %v364 = vld [vmem:[%s2 + $0x10] sm:$0xff]
        %v365 = vld [vmem:[%s2 + $0x18] sm:$0xff]
        %v366 = vld [vmem:[%s2 + $0x20] sm:$0xff]
        %v367 = vld [vmem:[%s2 + $0x28] sm:$0xff]
        %v368 = vld [vmem:[%s2 + $0x30] sm:$0xff]
        %v369 = vld [vmem:[%s2 + $0x38] sm:$0xff]
        %v370 = vld [vmem:[%s2 + $0x40] sm:$0xff]
        %v371 = vld [vmem:[%s2 + $0x48] sm:$0xff]
        %v372 = vld [vmem:[%s2 + $0x50] sm:$0xff]
        %v373 = vld [vmem:[%s2 + $0x58] sm:$0xff]
        %v374 = vld [vmem:[%s2 + $0x60] sm:$0xff]
        %v375 = vld [vmem:[%s2 + $0x68] sm:$0xff]
        %v376 = vld [vmem:[%s2 + $0x70] sm:$0xff]
        %v377 = vld [vmem:[%s2 + $0x78] sm:$0xff]
        %v378 = vld [vmem:[%s2 + $0x80] sm:$0xff]
        %v379 = vld [vmem:[%s2 + $0x88] sm:$0xff]
        %v380 = vld [vmem:[%s2 + $0x90] sm:$0xff]
        %v381 = vld [vmem:[%s2 + $0x98] sm:$0xff]
        %v382 = vld [vmem:[%s2 + $0xa0] sm:$0xff]
        %v383 = vld [vmem:[%s2 + $0xa8] sm:$0xff]
        %v384 = vld [vmem:[%s2 + $0xb0] sm:$0xff]
        %v385 = vld [vmem:[%s2 + $0xb8] sm:$0xff]
        %v386 = vld [vmem:[%s2 + $0xc0] sm:$0xff]
        %v387 = vld [vmem:[%s2 + $0xc8] sm:$0xff]
        %v388 = vld [vmem:[%s2 + $0xd0] sm:$0xff]
        %v389 = vld [vmem:[%s2 + $0xd8] sm:$0xff]
        %v390 = vld [vmem:[%s2 + $0xe0] sm:$0xff]
        %v391 = vld [vmem:[%s2 + $0xe8] sm:$0xff]
        %v392 = vld [vmem:[%s2 + $0xf0] sm:$0xff]
        %v393 = vld [vmem:[%s2 + $0xf8] sm:$0xff]
        %395 = vset.pattern.permute.xlu0 0
        %396 = vperm.xlu0 %395, %v362
        %v397 = vpop.permute.xlu0 %396
        %400 = vset.pattern.permute.xlu0 0
        %401 = vperm.xlu0 %400, %v363
        %v402 = vpop.permute.xlu0 %401
        %405 = vset.pattern.permute.xlu0 0
        %406 = vperm.xlu0 %405, %v364
        %v407 = vpop.permute.xlu0 %406
        %410 = vset.pattern.permute.xlu0 0
        %411 = vperm.xlu0 %410, %v365
        %v412 = vpop.permute.xlu0 %411
        %415 = vset.pattern.permute.xlu0 0
        %416 = vperm.xlu0 %415, %v366
        %v417 = vpop.permute.xlu0 %416
        %420 = vset.pattern.permute.xlu0 0
        %421 = vperm.xlu0 %420, %v367
        %v422 = vpop.permute.xlu0 %421
        %425 = vset.pattern.permute.xlu0 0
        %426 = vperm.xlu0 %425, %v368
        %v427 = vpop.permute.xlu0 %426
        %430 = vset.pattern.permute.xlu0 0
        %431 = vperm.xlu0 %430, %v369
        %v432 = vpop.permute.xlu0 %431
        %435 = vset.pattern.permute.xlu0 0
        %436 = vperm.xlu0 %435, %v370
        %v437 = vpop.permute.xlu0 %436
        %440 = vset.pattern.permute.xlu0 0
        %441 = vperm.xlu0 %440, %v371
        %v442 = vpop.permute.xlu0 %441
        %445 = vset.pattern.permute.xlu0 0
        %446 = vperm.xlu0 %445, %v372
        %v447 = vpop.permute.xlu0 %446
        %450 = vset.pattern.permute.xlu0 0
        %451 = vperm.xlu0 %450, %v373
        %v452 = vpop.permute.xlu0 %451
        %455 = vset.pattern.permute.xlu0 0
        %456 = vperm.xlu0 %455, %v374
        %v457 = vpop.permute.xlu0 %456
        %460 = vset.pattern.permute.xlu0 0
        %461 = vperm.xlu0 %460, %v375
        %v462 = vpop.permute.xlu0 %461
        %465 = vset.pattern.permute.xlu0 0
        %466 = vperm.xlu0 %465, %v376
        %v467 = vpop.permute.xlu0 %466
        %470 = vset.pattern.permute.xlu0 0
        %471 = vperm.xlu0 %470, %v377
        %v472 = vpop.permute.xlu0 %471
        %475 = vset.pattern.permute.xlu0 0
        %476 = vperm.xlu0 %475, %v378
        %v477 = vpop.permute.xlu0 %476
        %480 = vset.pattern.permute.xlu0 0
        %481 = vperm.xlu0 %480, %v379
        %v482 = vpop.permute.xlu0 %481
        %485 = vset.pattern.permute.xlu0 0
        %486 = vperm.xlu0 %485, %v380
        %v487 = vpop.permute.xlu0 %486
        %490 = vset.pattern.permute.xlu0 0
        %491 = vperm.xlu0 %490, %v381
        %v492 = vpop.permute.xlu0 %491
        %495 = vset.pattern.permute.xlu0 0
        %496 = vperm.xlu0 %495, %v382
        %v497 = vpop.permute.xlu0 %496
        %500 = vset.pattern.permute.xlu0 0
        %501 = vperm.xlu0 %500, %v383
        %v502 = vpop.permute.xlu0 %501
        %505 = vset.pattern.permute.xlu0 0
        %506 = vperm.xlu0 %505, %v384
        %v507 = vpop.permute.xlu0 %506
        %510 = vset.pattern.permute.xlu0 0
        %511 = vperm.xlu0 %510, %v385
        %v512 = vpop.permute.xlu0 %511
        %515 = vset.pattern.permute.xlu0 0
        %516 = vperm.xlu0 %515, %v386
        %v517 = vpop.permute.xlu0 %516
        %520 = vset.pattern.permute.xlu0 0
        %521 = vperm.xlu0 %520, %v387
        %v522 = vpop.permute.xlu0 %521
        %525 = vset.pattern.permute.xlu0 0
        %526 = vperm.xlu0 %525, %v388
        %v527 = vpop.permute.xlu0 %526
        %530 = vset.pattern.permute.xlu0 0
        %531 = vperm.xlu0 %530, %v389
        %v532 = vpop.permute.xlu0 %531
        %535 = vset.pattern.permute.xlu0 0
        %536 = vperm.xlu0 %535, %v390
        %v537 = vpop.permute.xlu0 %536
        %540 = vset.pattern.permute.xlu0 0
        %541 = vperm.xlu0 %540, %v391
        %v542 = vpop.permute.xlu0 %541
        %545 = vset.pattern.permute.xlu0 0
        %546 = vperm.xlu0 %545, %v392
        %v547 = vpop.permute.xlu0 %546
        %550 = vset.pattern.permute.xlu0 0
        %551 = vperm.xlu0 %550, %v393
        %v552 = vpop.permute.xlu0 %551
        %v586 = vunpack.c.l.b16 %v327
        %v587 = vunpack.c.l.b16 %v328
        %v588 = vunpack.c.l.b16 %v329
        %v589 = vunpack.c.l.b16 %v330
        %v590 = vunpack.c.l.b16 %v331
        %v591 = vunpack.c.l.b16 %v332
        %v592 = vunpack.c.l.b16 %v333
        %v593 = vunpack.c.l.b16 %v334
        %v594 = vunpack.c.l.b16 %v335
        %v595 = vunpack.c.l.b16 %v336
        %v596 = vunpack.c.l.b16 %v337
        %v597 = vunpack.c.l.b16 %v338
        %v598 = vunpack.c.l.b16 %v339
        %v599 = vunpack.c.l.b16 %v340
        %v600 = vunpack.c.l.b16 %v341
        %v601 = vunpack.c.l.b16 %v342
        %v602 = vunpack.c.l.b16 %v343
        %v603 = vunpack.c.l.b16 %v344
        %v604 = vunpack.c.l.b16 %v345
        %v605 = vunpack.c.l.b16 %v346
        %v606 = vunpack.c.l.b16 %v347
        %v607 = vunpack.c.l.b16 %v348
        %v608 = vunpack.c.l.b16 %v349
        %v609 = vunpack.c.l.b16 %v350
        %v610 = vunpack.c.l.b16 %v351
        %v611 = vunpack.c.l.b16 %v352
        %v612 = vunpack.c.l.b16 %v353
        %v613 = vunpack.c.l.b16 %v354
        %v614 = vunpack.c.l.b16 %v355
        %v615 = vunpack.c.l.b16 %v356
        %v616 = vunpack.c.l.b16 %v357
        %v617 = vunpack.c.l.b16 %v358
        %v618 = vpack.c.b16 %v587, %v586
        %v619 = vpack.c.b16 %v589, %v588
        %v620 = vpack.c.b16 %v591, %v590
        %v621 = vpack.c.b16 %v593, %v592
        %v622 = vpack.c.b16 %v595, %v594
        %v623 = vpack.c.b16 %v597, %v596
        %v624 = vpack.c.b16 %v599, %v598
        %v625 = vpack.c.b16 %v601, %v600
        %v626 = vpack.c.b16 %v603, %v602
        %v627 = vpack.c.b16 %v605, %v604
        %v628 = vpack.c.b16 %v607, %v606
        %v629 = vpack.c.b16 %v609, %v608
        %v630 = vpack.c.b16 %v611, %v610
        %v631 = vpack.c.b16 %v613, %v612
        %v632 = vpack.c.b16 %v615, %v614
        %v633 = vpack.c.b16 %v617, %v616
        %v637 = vunpack.c.l.b16 %v359
        %v638 = vunpack.c.l.b16 %v360
        %v639 = vunpack.c.l.b16 %v361
        %v640 = vpack.c.b16 %v638, %v637
        %v641 = vpack.c.b16 %v639, %v639
        %vm643 = vcmask 146432
        %v645 = vsel %vm643, %v618, 0
        %v648 = vsel %vm643, %v619, 0
        %v651 = vsel %vm643, %v620, 0
        %v654 = vsel %vm643, %v621, 0
        %v657 = vsel %vm643, %v622, 0
        %v660 = vsel %vm643, %v623, 0
        %v663 = vsel %vm643, %v624, 0
        %v666 = vsel %vm643, %v625, 0
        %v669 = vsel %vm643, %v626, 0
        %v672 = vsel %vm643, %v627, 0
        %v675 = vsel %vm643, %v628, 0
        %v678 = vsel %vm643, %v629, 0
        %v681 = vsel %vm643, %v630, 0
        %v684 = vsel %vm643, %v631, 0
        %v687 = vsel %vm643, %v632, 0
        %v690 = vsel %vm643, %v633, 0
        %vm692 = vcmask 1040384
        %v694 = vsel %vm692, %v641, 0
        %696 = vmatprep.subr.bf16.mxu0 0
        %697 = vmatpush1.bf16.msra.mxu0 %v640
        %698 = vmatprep.subr.bf16.mxu0 0
        %699 = vmatpush1.bf16.msra.mxu0 %v694
        %700 = vmatprep.subr.bf16.mxu0 0
        %701 = vmatpush1.bf16.msra.mxu0 0
        %702 = vmatprep.subr.bf16.mxu0 0
        %703 = vmatpush1.bf16.msra.mxu0 0
        %704 = vmatprep.subr.bf16.mxu0 0
        %705 = vmatpush1.bf16.msra.mxu0 0
        %706 = vmatprep.subr.bf16.mxu0 0
        %707 = vmatpush1.bf16.msra.mxu0 0
        %708 = vmatprep.subr.bf16.mxu0 0
        %709 = vmatpush1.bf16.msra.mxu0 0
        %710 = vmatprep.subr.bf16.mxu0 0
        %711 = vmatpush1.bf16.msra.mxu0 0
        %712 = vmatprep.subr.bf16.mxu0 0
        %713 = vmatpush1.bf16.msra.mxu0 0
        %714 = vmatprep.subr.bf16.mxu0 0
        %715 = vmatpush1.bf16.msra.mxu0 0
        %716 = vmatprep.subr.bf16.mxu0 0
        %717 = vmatpush1.bf16.msra.mxu0 0
        %718 = vmatprep.subr.bf16.mxu0 0
        %719 = vmatpush1.bf16.msra.mxu0 0
        %720 = vmatprep.subr.bf16.mxu0 0
        %721 = vmatpush1.bf16.msra.mxu0 0
        %722 = vmatprep.subr.bf16.mxu0 0
        %723 = vmatpush1.bf16.msra.mxu0 0
        %724 = vmatprep.subr.bf16.mxu0 0
        %725 = vmatpush1.bf16.msra.mxu0 0
        %726 = vmatprep.subr.bf16.mxu0 0
        %727 = vmatpush1.bf16.msra.mxu0 0
        %728 = vmatprep.mubr.bf16.mxu0 0
        %729 = vmatmul.mubr.bf16.gmra.mrb[0].mxu0 %v645
        %v730 = vpop.f32.mrb[0].mxu0
        %v731 = vadd.f32 %v397, %v730
        %v732 = vpop.f32.mrb[0].mxu0
        %v733 = vpop.f32.mrb[0].mxu0
        %v734 = vadd.f32 %v402, %v733
        %v735 = vpop.f32.mrb[0].mxu0
        %736 = vmatprep.mubr.bf16.mxu0 0
        %737 = vmatmul.mubr.bf16.gmra.mrb[0].mxu0 %v648
        %v738 = vpop.f32.mrb[0].mxu0
        %v739 = vadd.f32 %v407, %v738
        %v740 = vpop.f32.mrb[0].mxu0
        %v741 = vpop.f32.mrb[0].mxu0
        %v742 = vadd.f32 %v412, %v741
        %v743 = vpop.f32.mrb[0].mxu0
        %744 = vmatprep.mubr.bf16.mxu0 0
        %745 = vmatmul.mubr.bf16.gmra.mrb[0].mxu0 %v651
        %v746 = vpop.f32.mrb[0].mxu0
        %v747 = vadd.f32 %v417, %v746
        %v748 = vpop.f32.mrb[0].mxu0
        %v749 = vpop.f32.mrb[0].mxu0
        %v750 = vadd.f32 %v422, %v749
        %v751 = vpop.f32.mrb[0].mxu0
        %752 = vmatprep.mubr.bf16.mxu0 0
        %753 = vmatmul.mubr.bf16.gmra.mrb[0].mxu0 %v654
        %v754 = vpop.f32.mrb[0].mxu0
        %v755 = vadd.f32 %v427, %v754
        %v756 = vpop.f32.mrb[0].mxu0
        %v757 = vpop.f32.mrb[0].mxu0
        %v758 = vadd.f32 %v432, %v757
        %v759 = vpop.f32.mrb[0].mxu0
        %760 = vmatprep.mubr.bf16.mxu0 0
        %761 = vmatmul.mubr.bf16.gmra.mrb[0].mxu0 %v657
        %v762 = vpop.f32.mrb[0].mxu0
        %v763 = vadd.f32 %v437, %v762
        %v764 = vpop.f32.mrb[0].mxu0
        %v765 = vpop.f32.mrb[0].mxu0
        %v766 = vadd.f32 %v442, %v765
        %v767 = vpop.f32.mrb[0].mxu0
        %768 = vmatprep.mubr.bf16.mxu0 0
        %769 = vmatmul.mubr.bf16.gmra.mrb[0].mxu0 %v660
        %v770 = vpop.f32.mrb[0].mxu0
        %v771 = vadd.f32 %v447, %v770
        %v772 = vpop.f32.mrb[0].mxu0
        %v773 = vpop.f32.mrb[0].mxu0
        %v774 = vadd.f32 %v452, %v773
        %v775 = vpop.f32.mrb[0].mxu0
        %776 = vmatprep.mubr.bf16.mxu0 0
        %777 = vmatmul.mubr.bf16.gmra.mrb[0].mxu0 %v663
        %v778 = vpop.f32.mrb[0].mxu0
        %v779 = vadd.f32 %v457, %v778
        %v780 = vpop.f32.mrb[0].mxu0
        %v781 = vpop.f32.mrb[0].mxu0
        %v782 = vadd.f32 %v462, %v781
        %v783 = vpop.f32.mrb[0].mxu0
        %784 = vmatprep.mubr.bf16.mxu0 0
        %785 = vmatmul.mubr.bf16.gmra.mrb[0].mxu0 %v666
        %v786 = vpop.f32.mrb[0].mxu0
        %v787 = vadd.f32 %v467, %v786
        %v788 = vpop.f32.mrb[0].mxu0
        %v789 = vpop.f32.mrb[0].mxu0
        %v790 = vadd.f32 %v472, %v789
        %v791 = vpop.f32.mrb[0].mxu0
        %792 = vmatprep.mubr.bf16.mxu0 0
        %793 = vmatmul.mubr.bf16.gmra.mrb[0].mxu0 %v669
        %v794 = vpop.f32.mrb[0].mxu0
        %v795 = vadd.f32 %v477, %v794
        %v796 = vpop.f32.mrb[0].mxu0
        %v797 = vpop.f32.mrb[0].mxu0
        %v798 = vadd.f32 %v482, %v797
        %v799 = vpop.f32.mrb[0].mxu0
        %800 = vmatprep.mubr.bf16.mxu0 0
        %801 = vmatmul.mubr.bf16.gmra.mrb[0].mxu0 %v672
        %v802 = vpop.f32.mrb[0].mxu0
        %v803 = vadd.f32 %v487, %v802
        %v804 = vpop.f32.mrb[0].mxu0
        %v805 = vpop.f32.mrb[0].mxu0
        %v806 = vadd.f32 %v492, %v805
        %v807 = vpop.f32.mrb[0].mxu0
        %808 = vmatprep.mubr.bf16.mxu0 0
        %809 = vmatmul.mubr.bf16.gmra.mrb[0].mxu0 %v675
        %v810 = vpop.f32.mrb[0].mxu0
        %v811 = vadd.f32 %v497, %v810
        %v812 = vpop.f32.mrb[0].mxu0
        %v813 = vpop.f32.mrb[0].mxu0
        %v814 = vadd.f32 %v502, %v813
        %v815 = vpop.f32.mrb[0].mxu0
        %816 = vmatprep.mubr.bf16.mxu0 0
        %817 = vmatmul.mubr.bf16.gmra.mrb[0].mxu0 %v678
        %v818 = vpop.f32.mrb[0].mxu0
        %v819 = vadd.f32 %v507, %v818
        %v820 = vpop.f32.mrb[0].mxu0
        %v821 = vpop.f32.mrb[0].mxu0
        %v822 = vadd.f32 %v512, %v821
        %v823 = vpop.f32.mrb[0].mxu0
        %824 = vmatprep.mubr.bf16.mxu0 0
        %825 = vmatmul.mubr.bf16.gmra.mrb[0].mxu0 %v681
        %v826 = vpop.f32.mrb[0].mxu0
        %v827 = vadd.f32 %v517, %v826
        %v828 = vpop.f32.mrb[0].mxu0
        %v829 = vpop.f32.mrb[0].mxu0
        %v830 = vadd.f32 %v522, %v829
        %v831 = vpop.f32.mrb[0].mxu0
        %832 = vmatprep.mubr.bf16.mxu0 0
        %833 = vmatmul.mubr.bf16.gmra.mrb[0].mxu0 %v684
        %v834 = vpop.f32.mrb[0].mxu0
        %v835 = vadd.f32 %v527, %v834
        %v836 = vpop.f32.mrb[0].mxu0
        %v837 = vpop.f32.mrb[0].mxu0
        %v838 = vadd.f32 %v532, %v837
        %v839 = vpop.f32.mrb[0].mxu0
        %840 = vmatprep.mubr.bf16.mxu0 0
        %841 = vmatmul.mubr.bf16.gmra.mrb[0].mxu0 %v687
        %v842 = vpop.f32.mrb[0].mxu0
        %v843 = vadd.f32 %v537, %v842
        %v844 = vpop.f32.mrb[0].mxu0
        %v845 = vpop.f32.mrb[0].mxu0
        %v846 = vadd.f32 %v542, %v845
        %v847 = vpop.f32.mrb[0].mxu0
        %848 = vmatprep.mubr.bf16.mxu0 0
        %849 = vmatmul.mubr.bf16.gmra.mrb[0].mxu0 %v690
        %v850 = vpop.f32.mrb[0].mxu0
        %v851 = vadd.f32 %v547, %v850
        %v852 = vpop.f32.mrb[0].mxu0
        %v853 = vpop.f32.mrb[0].mxu0
        %v854 = vadd.f32 %v552, %v853
        %v855 = vpop.f32.mrb[0].mxu0
        %856 = vdwg.mxu0
        %v857 = vmax.f32 %v731, 0.0
        %v858 = vmax.f32 %v734, 0.0
        %v859 = vmax.f32 %v739, 0.0
        %v860 = vmax.f32 %v742, 0.0
        %v861 = vmax.f32 %v747, 0.0
        %v862 = vmax.f32 %v750, 0.0
        %v863 = vmax.f32 %v755, 0.0
        %v864 = vmax.f32 %v758, 0.0
        %v865 = vmax.f32 %v763, 0.0
        %v866 = vmax.f32 %v766, 0.0
        %v867 = vmax.f32 %v771, 0.0
        %v868 = vmax.f32 %v774, 0.0
        %v869 = vmax.f32 %v779, 0.0
        %v870 = vmax.f32 %v782, 0.0
        %v871 = vmax.f32 %v787, 0.0
        %v872 = vmax.f32 %v790, 0.0
        %v873 = vmax.f32 %v795, 0.0
        %v874 = vmax.f32 %v798, 0.0
        %v875 = vmax.f32 %v803, 0.0
        %v876 = vmax.f32 %v806, 0.0
        %v877 = vmax.f32 %v811, 0.0
        %v878 = vmax.f32 %v814, 0.0
        %v879 = vmax.f32 %v819, 0.0
        %v880 = vmax.f32 %v822, 0.0
        %v881 = vmax.f32 %v827, 0.0
        %v882 = vmax.f32 %v830, 0.0
        %v883 = vmax.f32 %v835, 0.0
        %v884 = vmax.f32 %v838, 0.0
        %v885 = vmax.f32 %v843, 0.0
        %v886 = vmax.f32 %v846, 0.0
        %v887 = vmax.f32 %v851, 0.0
        %v888 = vmax.f32 %v854, 0.0
        %v889 = vpack.c.bf16 %v858, %v857
        %v890 = vpack.c.bf16 %v860, %v859
        %v891 = vpack.c.bf16 %v862, %v861
        %v892 = vpack.c.bf16 %v864, %v863
        %v893 = vpack.c.bf16 %v866, %v865
        %v894 = vpack.c.bf16 %v868, %v867
        %v895 = vpack.c.bf16 %v870, %v869
        %v896 = vpack.c.bf16 %v872, %v871
        %v897 = vpack.c.bf16 %v874, %v873
        %v898 = vpack.c.bf16 %v876, %v875
        %v899 = vpack.c.bf16 %v878, %v877
        %v900 = vpack.c.bf16 %v880, %v879
        %v901 = vpack.c.bf16 %v882, %v881
        %v902 = vpack.c.bf16 %v884, %v883
        %v903 = vpack.c.bf16 %v886, %v885
        %v904 = vpack.c.bf16 %v888, %v887
        %v905 = vld [vmem:[%s3] sm:$0xff]
        %v906 = vld [vmem:[%s3 + $0x8] sm:$0xff]
        %v907 = vld [vmem:[%s3 + $0x10] sm:$0xff]
        %v908 = vld [vmem:[%s3 + $0x18] sm:$0xff]
        %v909 = vld [vmem:[%s3 + $0x20] sm:$0xff]
        %v910 = vld [vmem:[%s3 + $0x28] sm:$0xff]
        %v911 = vld [vmem:[%s3 + $0x30] sm:$0xff]
        %v912 = vld [vmem:[%s3 + $0x38] sm:$0xff]
        %v913 = vld [vmem:[%s3 + $0x40] sm:$0xff]
        %v914 = vld [vmem:[%s3 + $0x48] sm:$0xff]
        %v915 = vld [vmem:[%s3 + $0x50] sm:$0xff]
        %v916 = vld [vmem:[%s3 + $0x58] sm:$0xff]
        %v917 = vld [vmem:[%s3 + $0x60] sm:$0xff]
        %v918 = vld [vmem:[%s3 + $0x68] sm:$0xff]
        %v919 = vld [vmem:[%s3 + $0x70] sm:$0xff]
        %v920 = vld [vmem:[%s3 + $0x78] sm:$0xff]
        %v921 = vld [vmem:[%s3 + $0x80] sm:$0xff]
        %v922 = vld [vmem:[%s3 + $0x88] sm:$0xff]
        %v923 = vld [vmem:[%s3 + $0x90] sm:$0xff]
        %v924 = vld [vmem:[%s3 + $0x98] sm:$0xff]
        %v925 = vld [vmem:[%s3 + $0xa0] sm:$0xff]
        %v926 = vld [vmem:[%s3 + $0xa8] sm:$0xff]
        %v927 = vld [vmem:[%s3 + $0xb0] sm:$0xff]
        %v928 = vld [vmem:[%s3 + $0xb8] sm:$0xff]
        %v929 = vld [vmem:[%s3 + $0xc0] sm:$0xff]
        %v930 = vld [vmem:[%s3 + $0xc8] sm:$0xff]
        %v931 = vld [vmem:[%s3 + $0xd0] sm:$0xff]
        %v932 = vld [vmem:[%s3 + $0xd8] sm:$0xff]
        %v933 = vld [vmem:[%s3 + $0xe0] sm:$0xff]
        %v934 = vld [vmem:[%s3 + $0xe8] sm:$0xff]
        %v935 = vld [vmem:[%s3 + $0xf0] sm:$0xff]
        %v936 = vld [vmem:[%s3 + $0xf8] sm:$0xff]
        %v937 = vld [vmem:[%s4] sm:$0xff]
        %v938 = vld [vmem:[%s4 + $0x8] sm:$0xff]
        %v939 = vld [vmem:[%s4 + $0x10] sm:$0xff]
        %v940 = vld [vmem:[%s4 + $0x18] sm:$0xff]
        %v941 = vld [vmem:[%s4 + $0x20] sm:$0xff]
        %v942 = vld [vmem:[%s4 + $0x28] sm:$0xff]
        %v943 = vld [vmem:[%s4 + $0x30] sm:$0xff]
        %v944 = vld [vmem:[%s4 + $0x38] sm:$0xff]
        %v945 = vld [vmem:[%s4 + $0x40] sm:$0xff]
        %v946 = vld [vmem:[%s4 + $0x48] sm:$0xff]
        %v947 = vld [vmem:[%s4 + $0x50] sm:$0xff]
        %v948 = vld [vmem:[%s4 + $0x58] sm:$0xff]
        %v949 = vld [vmem:[%s4 + $0x60] sm:$0xff]
        %v950 = vld [vmem:[%s4 + $0x68] sm:$0xff]
        %v951 = vld [vmem:[%s4 + $0x70] sm:$0xff]
        %v952 = vld [vmem:[%s4 + $0x78] sm:$0xff]
        %v953 = vld [vmem:[%s4 + $0x80] sm:$0xff]
        %v954 = vld [vmem:[%s4 + $0x88] sm:$0xff]
        %v955 = vld [vmem:[%s4 + $0x90] sm:$0xff]
        %v956 = vld [vmem:[%s4 + $0x98] sm:$0xff]
        %v957 = vld [vmem:[%s4 + $0xa0] sm:$0xff]
        %v958 = vld [vmem:[%s4 + $0xa8] sm:$0xff]
        %v959 = vld [vmem:[%s4 + $0xb0] sm:$0xff]
        %v960 = vld [vmem:[%s4 + $0xb8] sm:$0xff]
        %v961 = vld [vmem:[%s4 + $0xc0] sm:$0xff]
        %v962 = vld [vmem:[%s4 + $0xc8] sm:$0xff]
        %v963 = vld [vmem:[%s4 + $0xd0] sm:$0xff]
        %v964 = vld [vmem:[%s4 + $0xd8] sm:$0xff]
        %v965 = vld [vmem:[%s4 + $0xe0] sm:$0xff]
        %v966 = vld [vmem:[%s4 + $0xe8] sm:$0xff]
        %v967 = vld [vmem:[%s4 + $0xf0] sm:$0xff]
        %v968 = vld [vmem:[%s4 + $0xf8] sm:$0xff]
        %970 = vset.pattern.permute.xlu0 0
        %971 = vperm.xlu0 %970, %v937
        %v972 = vpop.permute.xlu0 %971
        %975 = vset.pattern.permute.xlu0 0
        %976 = vperm.xlu0 %975, %v938
        %v977 = vpop.permute.xlu0 %976
        %980 = vset.pattern.permute.xlu0 0
        %981 = vperm.xlu0 %980, %v939
        %v982 = vpop.permute.xlu0 %981
        %985 = vset.pattern.permute.xlu0 0
        %986 = vperm.xlu0 %985, %v940
        %v987 = vpop.permute.xlu0 %986
        %990 = vset.pattern.permute.xlu0 0
        %991 = vperm.xlu0 %990, %v941
        %v992 = vpop.permute.xlu0 %991
        %995 = vset.pattern.permute.xlu0 0
        %996 = vperm.xlu0 %995, %v942
        %v997 = vpop.permute.xlu0 %996
        %1000 = vset.pattern.permute.xlu0 0
        %1001 = vperm.xlu0 %1000, %v943
        %v1002 = vpop.permute.xlu0 %1001
        %1005 = vset.pattern.permute.xlu0 0
        %1006 = vperm.xlu0 %1005, %v944
        %v1007 = vpop.permute.xlu0 %1006
        %1010 = vset.pattern.permute.xlu0 0
        %1011 = vperm.xlu0 %1010, %v945
        %v1012 = vpop.permute.xlu0 %1011
        %1015 = vset.pattern.permute.xlu0 0
        %1016 = vperm.xlu0 %1015, %v946
        %v1017 = vpop.permute.xlu0 %1016
        %1020 = vset.pattern.permute.xlu0 0
        %1021 = vperm.xlu0 %1020, %v947
        %v1022 = vpop.permute.xlu0 %1021
        %1025 = vset.pattern.permute.xlu0 0
        %1026 = vperm.xlu0 %1025, %v948
        %v1027 = vpop.permute.xlu0 %1026
        %1030 = vset.pattern.permute.xlu0 0
        %1031 = vperm.xlu0 %1030, %v949
        %v1032 = vpop.permute.xlu0 %1031
        %1035 = vset.pattern.permute.xlu0 0
        %1036 = vperm.xlu0 %1035, %v950
        %v1037 = vpop.permute.xlu0 %1036
        %1040 = vset.pattern.permute.xlu0 0
        %1041 = vperm.xlu0 %1040, %v951
        %v1042 = vpop.permute.xlu0 %1041
        %1045 = vset.pattern.permute.xlu0 0
        %1046 = vperm.xlu0 %1045, %v952
        %v1047 = vpop.permute.xlu0 %1046
        %1050 = vset.pattern.permute.xlu0 0
        %1051 = vperm.xlu0 %1050, %v953
        %v1052 = vpop.permute.xlu0 %1051
        %1055 = vset.pattern.permute.xlu0 0
        %1056 = vperm.xlu0 %1055, %v954
        %v1057 = vpop.permute.xlu0 %1056
        %1060 = vset.pattern.permute.xlu0 0
        %1061 = vperm.xlu0 %1060, %v955
        %v1062 = vpop.permute.xlu0 %1061
        %1065 = vset.pattern.permute.xlu0 0
        %1066 = vperm.xlu0 %1065, %v956
        %v1067 = vpop.permute.xlu0 %1066
        %1070 = vset.pattern.permute.xlu0 0
        %1071 = vperm.xlu0 %1070, %v957
        %v1072 = vpop.permute.xlu0 %1071
        %1075 = vset.pattern.permute.xlu0 0
        %1076 = vperm.xlu0 %1075, %v958
        %v1077 = vpop.permute.xlu0 %1076
        %1080 = vset.pattern.permute.xlu0 0
        %1081 = vperm.xlu0 %1080, %v959
        %v1082 = vpop.permute.xlu0 %1081
        %1085 = vset.pattern.permute.xlu0 0
        %1086 = vperm.xlu0 %1085, %v960
        %v1087 = vpop.permute.xlu0 %1086
        %1090 = vset.pattern.permute.xlu0 0
        %1091 = vperm.xlu0 %1090, %v961
        %v1092 = vpop.permute.xlu0 %1091
        %1095 = vset.pattern.permute.xlu0 0
        %1096 = vperm.xlu0 %1095, %v962
        %v1097 = vpop.permute.xlu0 %1096
        %1100 = vset.pattern.permute.xlu0 0
        %1101 = vperm.xlu0 %1100, %v963
        %v1102 = vpop.permute.xlu0 %1101
        %1105 = vset.pattern.permute.xlu0 0
        %1106 = vperm.xlu0 %1105, %v964
        %v1107 = vpop.permute.xlu0 %1106
        %1110 = vset.pattern.permute.xlu0 0
        %1111 = vperm.xlu0 %1110, %v965
        %v1112 = vpop.permute.xlu0 %1111
        %1115 = vset.pattern.permute.xlu0 0
        %1116 = vperm.xlu0 %1115, %v966
        %v1117 = vpop.permute.xlu0 %1116
        %1120 = vset.pattern.permute.xlu0 0
        %1121 = vperm.xlu0 %1120, %v967
        %v1122 = vpop.permute.xlu0 %1121
        %1125 = vset.pattern.permute.xlu0 0
        %1126 = vperm.xlu0 %1125, %v968
        %v1127 = vpop.permute.xlu0 %1126
        %v1161 = vunpack.c.l.b16 %v905
        %v1162 = vunpack.c.h.b16 %v905
        %v1163 = vunpack.c.l.b16 %v906
        %v1164 = vunpack.c.h.b16 %v906
        %v1165 = vunpack.c.l.b16 %v907
        %v1166 = vunpack.c.h.b16 %v907
        %v1167 = vunpack.c.l.b16 %v908
        %v1168 = vunpack.c.h.b16 %v908
        %v1169 = vunpack.c.l.b16 %v909
        %v1170 = vunpack.c.h.b16 %v909
        %v1171 = vunpack.c.l.b16 %v910
        %v1172 = vunpack.c.h.b16 %v910
        %v1173 = vunpack.c.l.b16 %v911
        %v1174 = vunpack.c.h.b16 %v911
        %v1175 = vunpack.c.l.b16 %v912
        %v1176 = vunpack.c.h.b16 %v912
        %v1177 = vunpack.c.l.b16 %v913
        %v1178 = vunpack.c.h.b16 %v913
        %v1179 = vunpack.c.l.b16 %v914
        %v1180 = vunpack.c.h.b16 %v914
        %v1181 = vunpack.c.l.b16 %v915
        %v1182 = vunpack.c.h.b16 %v915
        %v1183 = vunpack.c.l.b16 %v916
        %v1184 = vunpack.c.h.b16 %v916
        %v1185 = vunpack.c.l.b16 %v917
        %v1186 = vunpack.c.h.b16 %v917
        %v1187 = vunpack.c.l.b16 %v918
        %v1188 = vunpack.c.h.b16 %v918
        %v1189 = vunpack.c.l.b16 %v919
        %v1190 = vunpack.c.h.b16 %v919
        %v1191 = vunpack.c.l.b16 %v920
        %v1192 = vunpack.c.h.b16 %v920
        %v1193 = vunpack.c.l.b16 %v921
        %v1194 = vunpack.c.h.b16 %v921
        %v1195 = vunpack.c.l.b16 %v922
        %v1196 = vunpack.c.h.b16 %v922
        %v1197 = vunpack.c.l.b16 %v923
        %v1198 = vunpack.c.h.b16 %v923
        %v1199 = vunpack.c.l.b16 %v924
        %v1200 = vunpack.c.h.b16 %v924
        %v1201 = vunpack.c.l.b16 %v925
        %v1202 = vunpack.c.h.b16 %v925
        %v1203 = vunpack.c.l.b16 %v926
        %v1204 = vunpack.c.h.b16 %v926
        %v1205 = vunpack.c.l.b16 %v927
        %v1206 = vunpack.c.h.b16 %v927
        %v1207 = vunpack.c.l.b16 %v928
        %v1208 = vunpack.c.h.b16 %v928
        %v1209 = vunpack.c.l.b16 %v929
        %v1210 = vunpack.c.h.b16 %v929
        %v1211 = vunpack.c.l.b16 %v930
        %v1212 = vunpack.c.h.b16 %v930
        %v1213 = vunpack.c.l.b16 %v931
        %v1214 = vunpack.c.h.b16 %v931
        %v1215 = vunpack.c.l.b16 %v932
        %v1216 = vunpack.c.h.b16 %v932
        %v1217 = vunpack.c.l.b16 %v933
        %v1218 = vunpack.c.h.b16 %v933
        %v1219 = vunpack.c.l.b16 %v934
        %v1220 = vunpack.c.h.b16 %v934
        %v1221 = vunpack.c.l.b16 %v935
        %v1222 = vunpack.c.h.b16 %v935
        %v1223 = vunpack.c.l.b16 %v936
        %v1224 = vunpack.c.h.b16 %v936
        %v1225 = vpack.c.b16 %v1163, %v1161
        %v1226 = vpack.c.b16 %v1164, %v1162
        %v1227 = vpack.c.b16 %v1167, %v1165
        %v1228 = vpack.c.b16 %v1168, %v1166
        %v1229 = vpack.c.b16 %v1171, %v1169
        %v1230 = vpack.c.b16 %v1172, %v1170
        %v1231 = vpack.c.b16 %v1175, %v1173
        %v1232 = vpack.c.b16 %v1176, %v1174
        %v1233 = vpack.c.b16 %v1179, %v1177
        %v1234 = vpack.c.b16 %v1180, %v1178
        %v1235 = vpack.c.b16 %v1183, %v1181
        %v1236 = vpack.c.b16 %v1184, %v1182
        %v1237 = vpack.c.b16 %v1187, %v1185
        %v1238 = vpack.c.b16 %v1188, %v1186
        %v1239 = vpack.c.b16 %v1191, %v1189
        %v1240 = vpack.c.b16 %v1192, %v1190
        %v1241 = vpack.c.b16 %v1195, %v1193
        %v1242 = vpack.c.b16 %v1196, %v1194
        %v1243 = vpack.c.b16 %v1199, %v1197
        %v1244 = vpack.c.b16 %v1200, %v1198
        %v1245 = vpack.c.b16 %v1203, %v1201
        %v1246 = vpack.c.b16 %v1204, %v1202
        %v1247 = vpack.c.b16 %v1207, %v1205
        %v1248 = vpack.c.b16 %v1208, %v1206
        %v1249 = vpack.c.b16 %v1211, %v1209
        %v1250 = vpack.c.b16 %v1212, %v1210
        %v1251 = vpack.c.b16 %v1215, %v1213
        %v1252 = vpack.c.b16 %v1216, %v1214
        %v1253 = vpack.c.b16 %v1219, %v1217
        %v1254 = vpack.c.b16 %v1220, %v1218
        %v1255 = vpack.c.b16 %v1223, %v1221
        %v1256 = vpack.c.b16 %v1224, %v1222
        %1289 = vmatprep.subr.bf16.mxu0 0
        %1290 = vmatpush1.bf16.msra.mxu0 %v889
        %1291 = vmatprep.subr.bf16.mxu0 0
        %1292 = vmatpush1.bf16.msra.mxu0 %v890
        %1293 = vmatprep.subr.bf16.mxu0 0
        %1294 = vmatpush1.bf16.msra.mxu0 %v891
        %1295 = vmatprep.subr.bf16.mxu0 0
        %1296 = vmatpush1.bf16.msra.mxu0 %v892
        %1297 = vmatprep.subr.bf16.mxu0 0
        %1298 = vmatpush1.bf16.msra.mxu0 %v893
        %1299 = vmatprep.subr.bf16.mxu0 0
        %1300 = vmatpush1.bf16.msra.mxu0 %v894
        %1301 = vmatprep.subr.bf16.mxu0 0
        %1302 = vmatpush1.bf16.msra.mxu0 %v895
        %1303 = vmatprep.subr.bf16.mxu0 0
        %1304 = vmatpush1.bf16.msra.mxu0 %v896
        %1305 = vmatprep.subr.bf16.mxu0 0
        %1306 = vmatpush1.bf16.msra.mxu0 %v897
        %1307 = vmatprep.subr.bf16.mxu0 0
        %1308 = vmatpush1.bf16.msra.mxu0 %v898
        %1309 = vmatprep.subr.bf16.mxu0 0
        %1310 = vmatpush1.bf16.msra.mxu0 %v899
        %1311 = vmatprep.subr.bf16.mxu0 0
        %1312 = vmatpush1.bf16.msra.mxu0 %v900
        %1313 = vmatprep.subr.bf16.mxu0 0
        %1314 = vmatpush1.bf16.msra.mxu0 %v901
        %1315 = vmatprep.subr.bf16.mxu0 0
        %1316 = vmatpush1.bf16.msra.mxu0 %v902
        %1317 = vmatprep.subr.bf16.mxu0 0
        %1318 = vmatpush1.bf16.msra.mxu0 %v903
        %1319 = vmatprep.subr.bf16.mxu0 0
        %1320 = vmatpush1.bf16.msra.mxu0 %v904
        %1321 = vmatprep.mubr.bf16.mxu0 %v1226
        %1322 = vmatmul.mubr.bf16.gmra.mrb[0].mxu0 %v1225
        %v1323 = vpop.f32.mrb[0].mxu0
        %v1324 = vadd.f32 %v972, %v1323
        %v1325 = vpop.f32.mrb[0].mxu0
        %v1326 = vpop.f32.mrb[0].mxu0
        %v1327 = vadd.f32 %v977, %v1326
        %v1328 = vpop.f32.mrb[0].mxu0
        %1329 = vmatprep.mubr.bf16.mxu0 %v1228
        %1330 = vmatmul.mubr.bf16.gmra.mrb[0].mxu0 %v1227
        %v1331 = vpop.f32.mrb[0].mxu0
        %v1332 = vadd.f32 %v982, %v1331
        %v1333 = vpop.f32.mrb[0].mxu0
        %v1334 = vpop.f32.mrb[0].mxu0
        %v1335 = vadd.f32 %v987, %v1334
        %v1336 = vpop.f32.mrb[0].mxu0
        %1337 = vmatprep.mubr.bf16.mxu0 %v1230
        %1338 = vmatmul.mubr.bf16.gmra.mrb[0].mxu0 %v1229
        %v1339 = vpop.f32.mrb[0].mxu0
        %v1340 = vadd.f32 %v992, %v1339
        %v1341 = vpop.f32.mrb[0].mxu0
        %v1342 = vpop.f32.mrb[0].mxu0
        %v1343 = vadd.f32 %v997, %v1342
        %v1344 = vpop.f32.mrb[0].mxu0
        %1345 = vmatprep.mubr.bf16.mxu0 %v1232
        %1346 = vmatmul.mubr.bf16.gmra.mrb[0].mxu0 %v1231
        %v1347 = vpop.f32.mrb[0].mxu0
        %v1348 = vadd.f32 %v1002, %v1347
        %v1349 = vpop.f32.mrb[0].mxu0
        %v1350 = vpop.f32.mrb[0].mxu0
        %v1351 = vadd.f32 %v1007, %v1350
        %v1352 = vpop.f32.mrb[0].mxu0
        %1353 = vmatprep.mubr.bf16.mxu0 %v1234
        %1354 = vmatmul.mubr.bf16.gmra.mrb[0].mxu0 %v1233
        %v1355 = vpop.f32.mrb[0].mxu0
        %v1356 = vadd.f32 %v1012, %v1355
        %v1357 = vpop.f32.mrb[0].mxu0
        %v1358 = vpop.f32.mrb[0].mxu0
        %v1359 = vadd.f32 %v1017, %v1358
        %v1360 = vpop.f32.mrb[0].mxu0
        %1361 = vmatprep.mubr.bf16.mxu0 %v1236
        %1362 = vmatmul.mubr.bf16.gmra.mrb[0].mxu0 %v1235
        %v1363 = vpop.f32.mrb[0].mxu0
        %v1364 = vadd.f32 %v1022, %v1363
        %v1365 = vpop.f32.mrb[0].mxu0
        %v1366 = vpop.f32.mrb[0].mxu0
        %v1367 = vadd.f32 %v1027, %v1366
        %v1368 = vpop.f32.mrb[0].mxu0
        %1369 = vmatprep.mubr.bf16.mxu0 %v1238
        %1370 = vmatmul.mubr.bf16.gmra.mrb[0].mxu0 %v1237
        %v1371 = vpop.f32.mrb[0].mxu0
        %v1372 = vadd.f32 %v1032, %v1371
        %v1373 = vpop.f32.mrb[0].mxu0
        %v1374 = vpop.f32.mrb[0].mxu0
        %v1375 = vadd.f32 %v1037, %v1374
        %v1376 = vpop.f32.mrb[0].mxu0
        %1377 = vmatprep.mubr.bf16.mxu0 %v1240
        %1378 = vmatmul.mubr.bf16.gmra.mrb[0].mxu0 %v1239
        %v1379 = vpop.f32.mrb[0].mxu0
        %v1380 = vadd.f32 %v1042, %v1379
        %v1381 = vpop.f32.mrb[0].mxu0
        %v1382 = vpop.f32.mrb[0].mxu0
        %v1383 = vadd.f32 %v1047, %v1382
        %v1384 = vpop.f32.mrb[0].mxu0
        %1385 = vmatprep.mubr.bf16.mxu0 %v1242
        %1386 = vmatmul.mubr.bf16.gmra.mrb[0].mxu0 %v1241
        %v1387 = vpop.f32.mrb[0].mxu0
        %v1388 = vadd.f32 %v1052, %v1387
        %v1389 = vpop.f32.mrb[0].mxu0
        %v1390 = vpop.f32.mrb[0].mxu0
        %v1391 = vadd.f32 %v1057, %v1390
        %v1392 = vpop.f32.mrb[0].mxu0
        %1393 = vmatprep.mubr.bf16.mxu0 %v1244
        %1394 = vmatmul.mubr.bf16.gmra.mrb[0].mxu0 %v1243
        %v1395 = vpop.f32.mrb[0].mxu0
        %v1396 = vadd.f32 %v1062, %v1395
        %v1397 = vpop.f32.mrb[0].mxu0
        %v1398 = vpop.f32.mrb[0].mxu0
        %v1399 = vadd.f32 %v1067, %v1398
        %v1400 = vpop.f32.mrb[0].mxu0
        %1401 = vmatprep.mubr.bf16.mxu0 %v1246
        %1402 = vmatmul.mubr.bf16.gmra.mrb[0].mxu0 %v1245
        %v1403 = vpop.f32.mrb[0].mxu0
        %v1404 = vadd.f32 %v1072, %v1403
        %v1405 = vpop.f32.mrb[0].mxu0
        %v1406 = vpop.f32.mrb[0].mxu0
        %v1407 = vadd.f32 %v1077, %v1406
        %v1408 = vpop.f32.mrb[0].mxu0
        %1409 = vmatprep.mubr.bf16.mxu0 %v1248
        %1410 = vmatmul.mubr.bf16.gmra.mrb[0].mxu0 %v1247
        %v1411 = vpop.f32.mrb[0].mxu0
        %v1412 = vadd.f32 %v1082, %v1411
        %v1413 = vpop.f32.mrb[0].mxu0
        %v1414 = vpop.f32.mrb[0].mxu0
        %v1415 = vadd.f32 %v1087, %v1414
        %v1416 = vpop.f32.mrb[0].mxu0
        %1417 = vmatprep.mubr.bf16.mxu0 %v1250
        %1418 = vmatmul.mubr.bf16.gmra.mrb[0].mxu0 %v1249
        %v1419 = vpop.f32.mrb[0].mxu0
        %v1420 = vadd.f32 %v1092, %v1419
        %v1421 = vpop.f32.mrb[0].mxu0
        %v1422 = vpop.f32.mrb[0].mxu0
        %v1423 = vadd.f32 %v1097, %v1422
        %v1424 = vpop.f32.mrb[0].mxu0
        %1425 = vmatprep.mubr.bf16.mxu0 %v1252
        %1426 = vmatmul.mubr.bf16.gmra.mrb[0].mxu0 %v1251
        %v1427 = vpop.f32.mrb[0].mxu0
        %v1428 = vadd.f32 %v1102, %v1427
        %v1429 = vpop.f32.mrb[0].mxu0
        %v1430 = vpop.f32.mrb[0].mxu0
        %v1431 = vadd.f32 %v1107, %v1430
        %v1432 = vpop.f32.mrb[0].mxu0
        %1433 = vmatprep.mubr.bf16.mxu0 %v1254
        %1434 = vmatmul.mubr.bf16.gmra.mrb[0].mxu0 %v1253
        %v1435 = vpop.f32.mrb[0].mxu0
        %v1436 = vadd.f32 %v1112, %v1435
        %v1437 = vpop.f32.mrb[0].mxu0
        %v1438 = vpop.f32.mrb[0].mxu0
        %v1439 = vadd.f32 %v1117, %v1438
        %v1440 = vpop.f32.mrb[0].mxu0
        %1441 = vmatprep.mubr.bf16.mxu0 %v1256
        %1442 = vmatmul.mubr.bf16.gmra.mrb[0].mxu0 %v1255
        %v1443 = vpop.f32.mrb[0].mxu0
        %v1444 = vadd.f32 %v1122, %v1443
        %v1445 = vpop.f32.mrb[0].mxu0
        %v1446 = vpop.f32.mrb[0].mxu0
        %v1447 = vadd.f32 %v1127, %v1446
        %v1448 = vpop.f32.mrb[0].mxu0
        %1449 = vdwg.mxu0
        %v1450 = vmax.f32 %v1324, 0.0
        %v1451 = vmax.f32 %v1327, 0.0
        %v1452 = vmax.f32 %v1332, 0.0
        %v1453 = vmax.f32 %v1335, 0.0
        %v1454 = vmax.f32 %v1340, 0.0
        %v1455 = vmax.f32 %v1343, 0.0
        %v1456 = vmax.f32 %v1348, 0.0
        %v1457 = vmax.f32 %v1351, 0.0
        %v1458 = vmax.f32 %v1356, 0.0
        %v1459 = vmax.f32 %v1359, 0.0
        %v1460 = vmax.f32 %v1364, 0.0
        %v1461 = vmax.f32 %v1367, 0.0
        %v1462 = vmax.f32 %v1372, 0.0
        %v1463 = vmax.f32 %v1375, 0.0
        %v1464 = vmax.f32 %v1380, 0.0
        %v1465 = vmax.f32 %v1383, 0.0
        %v1466 = vmax.f32 %v1388, 0.0
        %v1467 = vmax.f32 %v1391, 0.0
        %v1468 = vmax.f32 %v1396, 0.0
        %v1469 = vmax.f32 %v1399, 0.0
        %v1470 = vmax.f32 %v1404, 0.0
        %v1471 = vmax.f32 %v1407, 0.0
        %v1472 = vmax.f32 %v1412, 0.0
        %v1473 = vmax.f32 %v1415, 0.0
        %v1474 = vmax.f32 %v1420, 0.0
        %v1475 = vmax.f32 %v1423, 0.0
        %v1476 = vmax.f32 %v1428, 0.0
        %v1477 = vmax.f32 %v1431, 0.0
        %v1478 = vmax.f32 %v1436, 0.0
        %v1479 = vmax.f32 %v1439, 0.0
        %v1480 = vmax.f32 %v1444, 0.0
        %v1481 = vmax.f32 %v1447, 0.0
        %v1482 = vpack.c.bf16 %v1451, %v1450
        %v1483 = vpack.c.bf16 %v1453, %v1452
        %v1484 = vpack.c.bf16 %v1455, %v1454
        %v1485 = vpack.c.bf16 %v1457, %v1456
        %v1486 = vpack.c.bf16 %v1459, %v1458
        %v1487 = vpack.c.bf16 %v1461, %v1460
        %v1488 = vpack.c.bf16 %v1463, %v1462
        %v1489 = vpack.c.bf16 %v1465, %v1464
        %v1490 = vpack.c.bf16 %v1467, %v1466
        %v1491 = vpack.c.bf16 %v1469, %v1468
        %v1492 = vpack.c.bf16 %v1471, %v1470
        %v1493 = vpack.c.bf16 %v1473, %v1472
        %v1494 = vpack.c.bf16 %v1475, %v1474
        %v1495 = vpack.c.bf16 %v1477, %v1476
        %v1496 = vpack.c.bf16 %v1479, %v1478
        %v1497 = vpack.c.bf16 %v1481, %v1480
        %v1498 = vld [vmem:[%s5] sm:$0xff]
        %v1500 = vunpack.c.l.b16 %v1498
        %v1501 = vunpack.c.h.b16 %v1498
        %v1502 = vpack.c.b16 %v1500, %v1500
        %v1503 = vpack.c.b16 %v1501, %v1501
        %1506 = vmatprep.subr.bf16.mxu0 0
        %1507 = vmatpush1.bf16.msra.mxu0 %v1482
        %1508 = vmatprep.subr.bf16.mxu0 0
        %1509 = vmatpush1.bf16.msra.mxu0 %v1483
        %1510 = vmatprep.subr.bf16.mxu0 0
        %1511 = vmatpush1.bf16.msra.mxu0 %v1484
        %1512 = vmatprep.subr.bf16.mxu0 0
        %1513 = vmatpush1.bf16.msra.mxu0 %v1485
        %1514 = vmatprep.subr.bf16.mxu0 0
        %1515 = vmatpush1.bf16.msra.mxu0 %v1486
        %1516 = vmatprep.subr.bf16.mxu0 0
        %1517 = vmatpush1.bf16.msra.mxu0 %v1487
        %1518 = vmatprep.subr.bf16.mxu0 0
        %1519 = vmatpush1.bf16.msra.mxu0 %v1488
        %1520 = vmatprep.subr.bf16.mxu0 0
        %1521 = vmatpush1.bf16.msra.mxu0 %v1489
        %1522 = vmatprep.subr.bf16.mxu0 0
        %1523 = vmatpush1.bf16.msra.mxu0 %v1490
        %1524 = vmatprep.subr.bf16.mxu0 0
        %1525 = vmatpush1.bf16.msra.mxu0 %v1491
        %1526 = vmatprep.subr.bf16.mxu0 0
        %1527 = vmatpush1.bf16.msra.mxu0 %v1492
        %1528 = vmatprep.subr.bf16.mxu0 0
        %1529 = vmatpush1.bf16.msra.mxu0 %v1493
        %1530 = vmatprep.subr.bf16.mxu0 0
        %1531 = vmatpush1.bf16.msra.mxu0 %v1494
        %1532 = vmatprep.subr.bf16.mxu0 0
        %1533 = vmatpush1.bf16.msra.mxu0 %v1495
        %1534 = vmatprep.subr.bf16.mxu0 0
        %1535 = vmatpush1.bf16.msra.mxu0 %v1496
        %1536 = vmatprep.subr.bf16.mxu0 0
        %1537 = vmatpush1.bf16.msra.mxu0 %v1497
        %1538 = vmatprep.mubr.bf16.mxu0 %v1503
        %1539 = vmatmul.mubr.bf16.gmra.mrb[0].mxu0 %v1502
        %v1540 = vpop.f32.mrb[0].mxu0
        %v1541 = vadd.f32 0.0, %v1540
        %v1542 = vpop.f32.mrb[0].mxu0
        %v1543 = vpop.f32.mrb[0].mxu0
        %v1544 = vpop.f32.mrb[0].mxu0
        %1545 = vdwg.mxu0
        %s1546 = sld [smem:[#allocation2]]
        %v1547 = vstv %s1546
        %v1548 = vadd.f32 %v1541, %v1547
        %1549 = vst [vmem:[%s325] sm:$0x1] %v1548
        %s1550 = sand.u32 %s182, 1
        %s1551 = scalar_lea.sflag [#allocation5], %s1550
        %s1552 = sand.u32 %s182, 1
        %s1553 = scalar_lea.vmem [#allocation4], %s1552
        // Predicated region
        $region90: #{tpu_custom_call.1} parent=84 // pred_check
          %p1554 = pneg %p192
        $region91: #{tpu_custom_call.1} parent=84 // pred_check_branch
          %1556 = sbr.rel (%p1554) target = $region93
        $region92: #{tpu_custom_call.1} parent=84 // pred_region
          %s1558 = ssub.s32 16, 16
          %1559 = vsyncadd %s1551, %s1558
          %s1560 = smul.addr %s22, 16
          %s1561 = scalar_lea.hbm %s7, %s1560
          %s1563 = sshll.u32 %s1553, 4
          %s1564 = int_to_ptr.vmem [resolvable:$true] %s1563
          %1566 = dma.vmem_to_hbm [thread:$0]  %s1564, 16, %s1561, %s1551
        $region93: #{tpu_custom_call.1} parent=84 // pred_fallthru
          _
      $region85: #{tpu_custom_call.1} parent=5 // pred_fallthru
        _
      %p1567 = scmp.le.s32.totalorder 2, %s17
      // Predicated region
      $region94: #{tpu_custom_call.1} parent=5 // pred_check
        %p1568 = pneg %p1567
      $region95: #{tpu_custom_call.1} parent=5 // pred_check_branch
        %1570 = sbr.rel (%p1568) target = $region97
      $region96: #{tpu_custom_call.1} parent=5 // pred_region
        %s1571 = ssub.s32 %s17, 2
        // Predicated region
        $region98: #{tpu_custom_call.1} parent=96 // pred_check
          %p1572 = pneg %p198
        $region99: #{tpu_custom_call.1} parent=96 // pred_check_branch
          %1574 = sbr.rel (%p1572) target = $region101
        $region100: #{tpu_custom_call.1} parent=96 // pred_region
          %s1575 = sand.u32 %s183, 1
          %s1576 = scalar_lea.sflag [#allocation5], %s1575
          %s1577 = sand.u32 %s183, 1
          %s1578 = scalar_lea.vmem [#allocation4], %s1577
          %1579 = dma.done %s1576, 16
        $region101: #{tpu_custom_call.1} parent=96 // pred_fallthru
          _
      $region97: #{tpu_custom_call.1} parent=5 // pred_fallthru
        _
    $region6: #{tpu_custom_call.1} parent=1 // loop_footer
      %s21 = sadd.s32 1, %s17
    $region7: #{tpu_custom_call.1} parent=1 // loop_footer_branch
      %16 = sbr.rel target = $region3
    $region8: #{tpu_custom_call.1} parent=1 // loop_exit
      _
    %1580 = vsyncpa [#allocation5], 1
    %s1581 = scalar_lea.sflag [#allocation5], 1
    %1582 = vsyncpa %s1581, 1

</llo_original>
